<compile_context>
chip_gen: v6e
topology: v6e:2x2x1
jax: 0.10.0
libtpu: 0.0.40
codegen_flags: <defaults>
</compile_context>

<pallas_src>
import functools

import jax
import jax.numpy as jnp
import numpy as np
from jax import lax
from jax.experimental import pallas as pl
from jax.experimental.pallas import tpu as pltpu

EPS = 1e-6
_MIB = 1024 * 1024


def _rmsnorm(t):
    # SimpleRMSNorm: x * rsqrt(mean(x^2, -1) + eps); no learnable scale. f32.
    return t * lax.rsqrt(jnp.mean(t * t, axis=-1, keepdims=True) + EPS)


def _silu(t):
    return t * jax.nn.sigmoid(t)


def decoder_layer_kernel(x_ref, wqkvu_ref, wout_ref, wl1_ref, wl2_ref, wl3_ref,
                         o_ref, kv_ref, *, hidden_dim, num_heads):
    """One grid step = one (batch, seq-chunk) tile.

    kv_ref: (num_heads, head_dim, head_dim) f32 running linear-attention state
    (sum over previous chunks of k^T v), carried across the chunk grid axis.
    """
    head_dim = hidden_dim // num_heads
    tq = x_ref.shape[1]

    # Reset the carried KV state at the first chunk of every batch element.
    @pl.when(pl.program_id(1) == 0)
    def _():
        kv_ref[...] = jnp.zeros_like(kv_ref)

    x = x_ref[0].astype(jnp.float32)                         # (tq, E) residual

    # ---- token_norm + fused qkvu projection (one wide MXU matmul) ----------
    xn = _rmsnorm(x).astype(jnp.bfloat16)
    qkvu = jnp.dot(xn, wqkvu_ref[...],
                   preferred_element_type=jnp.float32)       # (tq, 4H) f32
    q = _silu(qkvu[:, 0 * hidden_dim:1 * hidden_dim])        # (tq, H) f32
    k = _silu(qkvu[:, 1 * hidden_dim:2 * hidden_dim])
    v = qkvu[:, 2 * hidden_dim:3 * hidden_dim]
    u = qkvu[:, 3 * hidden_dim:4 * hidden_dim]               # f32 gate

    # ---- head split: one reshape+transpose (no per-head lane slicing) ------
    q3 = q.reshape(tq, num_heads, head_dim).transpose(1, 0, 2)    # (h, q, d)
    k3t = k.reshape(tq, num_heads, head_dim).transpose(1, 2, 0)   # (h, d, k)
    v3 = v.reshape(tq, num_heads, head_dim).transpose(1, 0, 2)    # (h, k, d)

    # ---- intra-chunk causal attention (bf16 MXU inputs, f32 accumulate) ----
    scores = jnp.einsum('hqd,hdk->hqk', q3.astype(jnp.bfloat16),
                        k3t.astype(jnp.bfloat16),
                        preferred_element_type=jnp.float32)       # (h, q, k)
    row = lax.broadcasted_iota(jnp.int32, (tq, tq), 0)
    col = lax.broadcasted_iota(jnp.int32, (tq, tq), 1)
    causal = (row >= col)[None, :, :]
    # Mask after the bf16 cast (cheaper select); masked value is exactly 0.
    scores_b = jnp.where(causal, scores.astype(jnp.bfloat16), 0)
    intra = jnp.einsum('hqk,hkd->hqd', scores_b, v3.astype(jnp.bfloat16),
                       preferred_element_type=jnp.float32)        # (h, q, d)

    # ---- inter-chunk contribution via carried state + state update ---------
    # These matmuls are tiny (d x d per head): keep f32 inputs so the
    # unnormalized running state does not drift in bf16 at long N.
    inter = jnp.einsum('hqd,hde->hqe', q3, kv_ref[...],
                       preferred_element_type=jnp.float32)        # (h, q, d)
    kv_ref[...] = kv_ref[...] + jnp.einsum(
        'hdk,hke->hde', k3t, v3, preferred_element_type=jnp.float32)

    attn3 = intra + inter                                         # (h, q, d)
    attn = attn3.transpose(1, 0, 2).reshape(tq, hidden_dim)       # (q, H)

    # ---- norm, gate, out_proj, residual -------------------------------------
    attn = _rmsnorm(attn) * u                                     # f32
    attn = jnp.dot(attn.astype(jnp.bfloat16), wout_ref[...],
                   preferred_element_type=jnp.float32)            # (tq, E)
    x1 = x + attn

    # ---- channel_norm + GLU channel mixer + residual ------------------------
    x2 = _rmsnorm(x1).astype(jnp.bfloat16)
    o1 = jnp.dot(x2, wl1_ref[...], preferred_element_type=jnp.float32)
    o2 = jnp.dot(x2, wl2_ref[...], preferred_element_type=jnp.float32)
    glu = jnp.dot((o1 * o2).astype(jnp.bfloat16), wl3_ref[...],
                  preferred_element_type=jnp.float32)
    o_ref[0] = (x1 + glu).astype(o_ref.dtype)


def _tpu_vmem_capacity():
    try:
        return int(pltpu.get_tpu_info().vmem_capacity_bytes)
    except Exception:
        return 128 * _MIB


def _vmem_limit_bytes():
    cap = _tpu_vmem_capacity()
    if cap <= 64 * _MIB:
        # v7x-class (64 MiB): leave ~8 MiB for Mosaic internal scratch.
        return max(32 * _MIB, cap - 8 * _MIB)
    # v5e/v6e-class (128 MiB).
    return min(int(0.85 * cap), 110 * _MIB)


def _default_seq_block():
    # tq is the M dim of every matmul; >=256 fills the 256x256 MXU, but the
    # live f32 (heads, tq, tq) intra-chunk scores grow quadratically in tq:
    # cap at 256 on 64 MiB-VMEM chips (v7x) and 512 on 128 MiB chips.
    return 256 if _tpu_vmem_capacity() <= 64 * _MIB else 512


def _choose_seq_chunk(n, seq_block):
    cap = min(seq_block, n)
    if n <= cap:
        return n
    # Largest multiple-of-8 divisor of n that is <= seq_block: keeps the
    # chunked O(N*tq) attention instead of reverting to O(N^2).
    for cand in range(cap - cap % 8, 0, -8):
        if n % cand == 0:
            return cand
    # TODO(synk): pad N up to a multiple of seq_block for oddly-sized long
    # sequences instead of falling back to a single full-length chunk.
    return n


def _resident_weight_spec(shape):
    # Constant-index weight tile: the DMA is issued once; Buffered(1) disables
    # the default double buffering so only ONE VMEM copy of each weight is
    # resident (halves resident weight VMEM).
    index_map = lambda i, c: (0, 0)
    try:
        return pl.BlockSpec(shape, index_map, pipeline_mode=pl.Buffered(1))
    except Exception:  # pipeline_mode / Buffered unavailable on this jax
        return pl.BlockSpec(shape, index_map)


def transnormer_decoder_layer(x, w_qkvu, w_out, w_l1, w_l2, w_l3, *,
                              hidden_dim, num_heads, seq_block=None,
                              donate_x=False):
    """TransnormerDecoderLayer forward (training path, attn_mask=None,
    slope_rate=None, no LRPE / KV-cache, bias=False).

    Weights are (in_features, out_features) — the transpose of nn.Linear.weight.
    For best performance embed_dim / hidden_dim / glu_dim should be multiples
    of 128 and head_dim 64 or 128 (lane alignment); small unaligned dims still
    run correctly.  Output dtype follows x.dtype (pass bf16 x on v5e to halve
    per-step HBM traffic).  Set donate_x=True only when the caller donates x.
    """
    b, n, e = x.shape
    g = w_l1.shape[1]
    assert hidden_dim % num_heads == 0
    assert w_qkvu.shape == (e, 4 * hidden_dim)
    assert w_out.shape == (hidden_dim, e)
    assert w_l2.shape == (e, g) and w_l3.shape == (g, e)
    head_dim = hidden_dim // num_heads

    if seq_block is None:
        seq_block = _default_seq_block()
    tq = _choose_seq_chunk(n, seq_block)
    num_chunks = n // tq

    # bf16 MXU weight inputs; all accumulation stays f32 in-kernel.
    wq = w_qkvu.astype(jnp.bfloat16)
    wo = w_out.astype(jnp.bfloat16)
    w1 = w_l1.astype(jnp.bfloat16)
    w2 = w_l2.astype(jnp.bfloat16)
    w3 = w_l3.astype(jnp.bfloat16)

    kernel = functools.partial(decoder_layer_kernel,
                               hidden_dim=hidden_dim, num_heads=num_heads)

    # TODO(synk): with B == 1 on v7x the second TensorCore idles; a genuinely
    #             parallel leading axis (heads / output features) is needed.
    extra = {"input_output_aliases": {0: 0}} if donate_x else {}

    return pl.pallas_call(
        kernel,
        out_shape=jax.ShapeDtypeStruct((b, n, e), x.dtype),
        grid_spec=pltpu.PrefetchScalarGridSpec(
            num_scalar_prefetch=0,
            grid=(b, num_chunks),
            in_specs=[
                pl.BlockSpec((1, tq, e), lambda i, c: (i, c, 0)),
                _resident_weight_spec((e, 4 * hidden_dim)),
                _resident_weight_spec((hidden_dim, e)),
                _resident_weight_spec((e, g)),
                _resident_weight_spec((e, g)),
                _resident_weight_spec((g, e)),
            ],
            out_specs=pl.BlockSpec((1, tq, e), lambda i, c: (i, c, 0)),
            scratch_shapes=[
                pltpu.VMEM((num_heads, head_dim, head_dim), jnp.float32),
            ],
        ),
        compiler_params=pltpu.CompilerParams(
            # chunk axis carries the KV state -> must run sequentially.
            dimension_semantics=("parallel", "arbitrary"),
            vmem_limit_bytes=_vmem_limit_bytes(),
        ),
        **extra,
    )(x, wq, wo, w1, w2, w3)


def reference(x, w_qkvu, w_out, w_l1, w_l2, w_l3, *, hidden_dim, num_heads):
    # Pure-JAX f32 reference mirroring the PyTorch forward.
    b, n, e = x.shape
    hd = hidden_dim // num_heads
    residual = x
    xn = _rmsnorm(x)
    qkvu = xn @ w_qkvu
    q, k, v, u = jnp.split(qkvu, 4, axis=-1)

    def to_heads(t):  # b n (h d) -> b h n d
        return t.reshape(b, n, num_heads, hd).transpose(0, 2, 1, 3)

    q, k, v = map(to_heads, (_silu(q), _silu(k), v))
    mask = jnp.tril(jnp.ones((n, n), jnp.float32))
    scores = jnp.einsum('bhnd,bhmd->bhnm', q, k) * mask
    out = jnp.einsum('bhnm,bhmd->bhnd', scores, v)
    out = out.transpose(0, 2, 1, 3).reshape(b, n, hidden_dim)
    out = _rmsnorm(out) * u
    out = out @ w_out
    x1 = residual + out
    x2 = _rmsnorm(x1)
    glu = ((x2 @ w_l1) * (x2 @ w_l2)) @ w_l3
    return x1 + glu


if __name__ == "__main__":
    B, N, E = 2, 16, 32
    HIDDEN = 32
    HEADS = 4
    GLU_DIM = 32

    key = jax.random.PRNGKey(0)
    ks = jax.random.split(key, 6)
    x = jax.random.normal(ks[0], (B, N, E), jnp.float32)

    def init_w(k, fan_in, shape):
        bound = 1.0 / np.sqrt(fan_in)
        return jax.random.uniform(k, shape, jnp.float32, -bound, bound)

    # Stored as (in_features, out_features); nn.Linear weight is the transpose.
    w_qkvu = init_w(ks[1], E, (E, 4 * HIDDEN))
    w_out = init_w(ks[2], HIDDEN, (HIDDEN, E))
    w_l1 = init_w(ks[3], E, (E, GLU_DIM))
    w_l2 = init_w(ks[4], E, (E, GLU_DIM))
    w_l3 = init_w(ks[5], GLU_DIM, (GLU_DIM, E))

    # seq_block=8 -> 2 sequence chunks, exercising the carried KV state.
    run = jax.jit(functools.partial(
        transnormer_decoder_layer,
        hidden_dim=HIDDEN, num_heads=HEADS, seq_block=8))
    out = jax.block_until_ready(run(x, w_qkvu, w_out, w_l1, w_l2, w_l3))

    ref = reference(x, w_qkvu, w_out, w_l1, w_l2, w_l3,
                    hidden_dim=HIDDEN, num_heads=HEADS)
    # bf16 matmul inputs (f32 accumulation) vs. a pure-f32 reference ->
    # expected relative error ~1e-3..1e-2; 2e-2 tolerance is comfortably safe.
    np.testing.assert_allclose(np.asarray(out), np.asarray(ref),
                               rtol=2e-2, atol=2e-2)
    print("KERNEL_OK")
</pallas_src>

<mosaic_0001>
module attributes {stable_mosaic.version = 11 : i64} {
  func.func @decoder_layer_kernel(%arg0: i32, %arg1: i32, %arg2: memref<1x8x32xf32, #tpu.memory_space<vmem>>, %arg3: memref<32x128xbf16, #tpu.memory_space<vmem>>, %arg4: memref<32x32xbf16, #tpu.memory_space<vmem>>, %arg5: memref<32x32xbf16, #tpu.memory_space<vmem>>, %arg6: memref<32x32xbf16, #tpu.memory_space<vmem>>, %arg7: memref<32x32xbf16, #tpu.memory_space<vmem>>, %arg8: memref<1x8x32xf32, #tpu.memory_space<vmem>>, %arg9: memref<4x8x8xf32, #tpu.memory_space<vmem>>) attributes {dimension_semantics = [#tpu.dimension_semantics<parallel>, #tpu.dimension_semantics<arbitrary>], iteration_bounds = array<i64: 2, 2>, scalar_prefetch = 0 : i64, scratch_operands = 1 : i64, tpu.core_type = #tpu.core_type<tc>, window_params = [{transform_indices = @transform_0, window_bounds = array<i64: 1, 8, 32>}, {pipeline_mode = #tpu.pipeline_mode<synchronous>, transform_indices = @transform_1, window_bounds = array<i64: 32, 128>}, {pipeline_mode = #tpu.pipeline_mode<synchronous>, transform_indices = @transform_2, window_bounds = array<i64: 32, 32>}, {pipeline_mode = #tpu.pipeline_mode<synchronous>, transform_indices = @transform_3, window_bounds = array<i64: 32, 32>}, {pipeline_mode = #tpu.pipeline_mode<synchronous>, transform_indices = @transform_4, window_bounds = array<i64: 32, 32>}, {pipeline_mode = #tpu.pipeline_mode<synchronous>, transform_indices = @transform_5, window_bounds = array<i64: 32, 32>}, {transform_indices = @transform_6, window_bounds = array<i64: 1, 8, 32>}]} {
    %c0_i32 = arith.constant 0 : i32
    %0 = arith.cmpi eq, %arg1, %c0_i32 : i32
    %1 = arith.extui %0 : i1 to i32
    %c0_i32_0 = arith.constant 0 : i32
    %2 = arith.cmpi ne, %1, %c0_i32_0 : i32
    scf.if %2 {
      %cst_45 = arith.constant 0.000000e+00 : f32
      %102 = vector.broadcast %cst_45 : f32 to vector<4x8x8xf32>
      %c0_46 = arith.constant 0 : index
      %c0_47 = arith.constant 0 : index
      %c0_48 = arith.constant 0 : index
      %103 = vector.load %arg9[%c0_46, %c0_47, %c0_48] : memref<4x8x8xf32, #tpu.memory_space<vmem>>, vector<4x8x8xf32>
      tpu.vector_store %arg9[%c0_46, %c0_47, %c0_48], %102 {strides = array<i32>} : memref<4x8x8xf32, #tpu.memory_space<vmem>>, vector<4x8x8xf32>,
    } else {
    }
    %c0 = arith.constant 0 : index
    %c0_1 = arith.constant 0 : index
    %c0_2 = arith.constant 0 : index
    %3 = vector.load %arg2[%c0, %c0_1, %c0_2] : memref<1x8x32xf32, #tpu.memory_space<vmem>>, vector<1x8x32xf32>
    %4 = vector.shape_cast %3 : vector<1x8x32xf32> to vector<8x32xf32>
    %5 = arith.mulf %4, %4 : vector<8x32xf32>
    %cst = arith.constant dense<0.000000e+00> : vector<8xf32>
    %6 = vector.multi_reduction <add>, %5, %cst [1] : vector<8x32xf32> to vector<8xf32>
    %7 = vector.shape_cast %6 : vector<8xf32> to vector<8x1xf32>
    %cst_3 = arith.constant 3.200000e+01 : f32
    %8 = vector.broadcast %cst_3 : f32 to vector<8x1xf32>
    %9 = arith.divf %7, %8 : vector<8x1xf32>
    %cst_4 = arith.constant 9.99999997E-7 : f32
    %10 = vector.broadcast %cst_4 : f32 to vector<8x1xf32>
    %11 = arith.addf %9, %10 : vector<8x1xf32>
    %12 = math.rsqrt %11 : vector<8x1xf32>
    %13 = vector.broadcast %12 : vector<8x1xf32> to vector<8x32xf32>
    %14 = arith.mulf %4, %13 : vector<8x32xf32>
    %15 = arith.truncf %14 : vector<8x32xf32> to vector<8x32xbf16>
    %c0_5 = arith.constant 0 : index
    %c0_6 = arith.constant 0 : index
    %16 = vector.load %arg3[%c0_5, %c0_6] : memref<32x128xbf16, #tpu.memory_space<vmem>>, vector<32x128xbf16>
    %cst_7 = arith.constant dense<0.000000e+00> : vector<8x128xf32>
    %17 = tpu.matmul %15, %16, %cst_7 {dimension_numbers = #tpu.dot_dimension_numbers<[1], [0], [0], [1], [0, 0, 1, 1], [], []>} : vector<8x32xbf16>, vector<32x128xbf16>, vector<8x128xf32> -> vector<8x128xf32>
    %18 = vector.extract_strided_slice %17 {offsets = [0, 0], sizes = [8, 32], strides = [1, 1]} : vector<8x128xf32> to vector<8x32xf32>
    %19 = arith.negf %18 : vector<8x32xf32>
    %20 = math.exp %19 : vector<8x32xf32>
    %cst_8 = arith.constant 1.000000e+00 : f32
    %21 = vector.broadcast %cst_8 : f32 to vector<8x32xf32>
    %22 = arith.addf %21, %20 : vector<8x32xf32>
    %23 = arith.divf %21, %22 : vector<8x32xf32>
    %24 = arith.mulf %18, %23 : vector<8x32xf32>
    %25 = vector.extract_strided_slice %17 {offsets = [0, 32], sizes = [8, 32], strides = [1, 1]} : vector<8x128xf32> to vector<8x32xf32>
    %26 = arith.negf %25 : vector<8x32xf32>
    %27 = math.exp %26 : vector<8x32xf32>
    %cst_9 = arith.constant 1.000000e+00 : f32
    %28 = vector.broadcast %cst_9 : f32 to vector<8x32xf32>
    %29 = arith.addf %28, %27 : vector<8x32xf32>
    %30 = arith.divf %28, %29 : vector<8x32xf32>
    %31 = arith.mulf %25, %30 : vector<8x32xf32>
    %32 = vector.extract_strided_slice %17 {offsets = [0, 64], sizes = [8, 32], strides = [1, 1]} : vector<8x128xf32> to vector<8x32xf32>
    %33 = vector.extract_strided_slice %17 {offsets = [0, 96], sizes = [8, 32], strides = [1, 1]} : vector<8x128xf32> to vector<8x32xf32>
    %34 = vector.shape_cast %24 : vector<8x32xf32> to vector<8x4x8xf32>
    %35 = tpu.transpose %34, [1, 0, 2] : vector<8x4x8xf32> -> vector<4x8x8xf32>
    %36 = vector.shape_cast %31 : vector<8x32xf32> to vector<8x4x8xf32>
    %37 = tpu.transpose %36, [1, 2, 0] : vector<8x4x8xf32> -> vector<4x8x8xf32>
    %38 = vector.shape_cast %32 : vector<8x32xf32> to vector<8x4x8xf32>
    %39 = tpu.transpose %38, [1, 0, 2] : vector<8x4x8xf32> -> vector<4x8x8xf32>
    %40 = arith.truncf %35 : vector<4x8x8xf32> to vector<4x8x8xbf16>
    %41 = arith.truncf %37 : vector<4x8x8xf32> to vector<4x8x8xbf16>
    "tpu.trace_start"() <{level = 10 : i32, message = "hqd,hdk->hqk"}> : () -> ()
    %cst_10 = arith.constant dense<0.000000e+00> : vector<4x8x8xf32>
    %42 = tpu.matmul %40, %41, %cst_10 {dimension_numbers = #tpu.dot_dimension_numbers<[2], [1], [1], [2], [0, 0, 0, 1, 1, 2], [0], [0]>} : vector<4x8x8xbf16>, vector<4x8x8xbf16>, vector<4x8x8xf32> -> vector<4x8x8xf32>
    "tpu.trace_stop"() : () -> ()
    %43 = tpu.iota {dimensions = array<i32: 0>} : vector<8x8xi32>
    %44 = tpu.iota {dimensions = array<i32: 1>} : vector<8x8xi32>
    %45 = arith.cmpi sge, %43, %44 : vector<8x8xi32>
    %46 = vector.shape_cast %45 : vector<8x8xi1> to vector<1x8x8xi1>
    %47 = arith.truncf %42 : vector<4x8x8xf32> to vector<4x8x8xbf16>
    %c0_i32_11 = arith.constant 0 : i32
    %48 = arith.sitofp %c0_i32_11 : i32 to bf16
    %49 = vector.shape_cast %46 : vector<1x8x8xi1> to vector<1x8x8xi1>
    %50 = vector.broadcast %49 : vector<1x8x8xi1> to vector<4x8x8xi1>
    %51 = vector.broadcast %48 : bf16 to vector<4x8x8xbf16>
    %52 = arith.select %50, %47, %51 : vector<4x8x8xi1>, vector<4x8x8xbf16>
    %53 = arith.truncf %39 : vector<4x8x8xf32> to vector<4x8x8xbf16>
    "tpu.trace_start"() <{level = 10 : i32, message = "hqk,hkd->hqd"}> : () -> ()
    %cst_12 = arith.constant dense<0.000000e+00> : vector<4x8x8xf32>
    %54 = tpu.matmul %52, %53, %cst_12 {dimension_numbers = #tpu.dot_dimension_numbers<[2], [1], [1], [2], [0, 0, 0, 1, 1, 2], [0], [0]>} : vector<4x8x8xbf16>, vector<4x8x8xbf16>, vector<4x8x8xf32> -> vector<4x8x8xf32>
    "tpu.trace_stop"() : () -> ()
    %c0_13 = arith.constant 0 : index
    %c0_14 = arith.constant 0 : index
    %c0_15 = arith.constant 0 : index
    %55 = vector.load %arg9[%c0_13, %c0_14, %c0_15] : memref<4x8x8xf32, #tpu.memory_space<vmem>>, vector<4x8x8xf32>
    "tpu.trace_start"() <{level = 10 : i32, message = "hqd,hde->hqe"}> : () -> ()
    %cst_16 = arith.constant dense<0.000000e+00> : vector<4x8x8xf32>
    %56 = tpu.matmul %35, %55, %cst_16 {dimension_numbers = #tpu.dot_dimension_numbers<[2], [1], [1], [2], [0, 0, 0, 1, 1, 2], [0], [0]>} : vector<4x8x8xf32>, vector<4x8x8xf32>, vector<4x8x8xf32> -> vector<4x8x8xf32>
    "tpu.trace_stop"() : () -> ()
    %c0_17 = arith.constant 0 : index
    %c0_18 = arith.constant 0 : index
    %c0_19 = arith.constant 0 : index
    %57 = vector.load %arg9[%c0_17, %c0_18, %c0_19] : memref<4x8x8xf32, #tpu.memory_space<vmem>>, vector<4x8x8xf32>
    "tpu.trace_start"() <{level = 10 : i32, message = "hdk,hke->hde"}> : () -> ()
    %cst_20 = arith.constant dense<0.000000e+00> : vector<4x8x8xf32>
    %58 = tpu.matmul %37, %39, %cst_20 {dimension_numbers = #tpu.dot_dimension_numbers<[2], [1], [1], [2], [0, 0, 0, 1, 1, 2], [0], [0]>} : vector<4x8x8xf32>, vector<4x8x8xf32>, vector<4x8x8xf32> -> vector<4x8x8xf32>
    "tpu.trace_stop"() : () -> ()
    %59 = arith.addf %57, %58 : vector<4x8x8xf32>
    %c0_21 = arith.constant 0 : index
    %c0_22 = arith.constant 0 : index
    %c0_23 = arith.constant 0 : index
    %60 = vector.load %arg9[%c0_21, %c0_22, %c0_23] : memref<4x8x8xf32, #tpu.memory_space<vmem>>, vector<4x8x8xf32>
    tpu.vector_store %arg9[%c0_21, %c0_22, %c0_23], %59 {strides = array<i32>} : memref<4x8x8xf32, #tpu.memory_space<vmem>>, vector<4x8x8xf32>,
    %61 = arith.addf %54, %56 : vector<4x8x8xf32>
    %62 = tpu.transpose %61, [1, 0, 2] : vector<4x8x8xf32> -> vector<8x4x8xf32>
    %63 = vector.shape_cast %62 : vector<8x4x8xf32> to vector<8x32xf32>
    %64 = arith.mulf %63, %63 : vector<8x32xf32>
    %cst_24 = arith.constant dense<0.000000e+00> : vector<8xf32>
    %65 = vector.multi_reduction <add>, %64, %cst_24 [1] : vector<8x32xf32> to vector<8xf32>
    %66 = vector.shape_cast %65 : vector<8xf32> to vector<8x1xf32>
    %cst_25 = arith.constant 3.200000e+01 : f32
    %67 = vector.broadcast %cst_25 : f32 to vector<8x1xf32>
    %68 = arith.divf %66, %67 : vector<8x1xf32>
    %cst_26 = arith.constant 9.99999997E-7 : f32
    %69 = vector.broadcast %cst_26 : f32 to vector<8x1xf32>
    %70 = arith.addf %68, %69 : vector<8x1xf32>
    %71 = math.rsqrt %70 : vector<8x1xf32>
    %72 = vector.broadcast %71 : vector<8x1xf32> to vector<8x32xf32>
    %73 = arith.mulf %63, %72 : vector<8x32xf32>
    %74 = arith.mulf %73, %33 : vector<8x32xf32>
    %75 = arith.truncf %74 : vector<8x32xf32> to vector<8x32xbf16>
    %c0_27 = arith.constant 0 : index
    %c0_28 = arith.constant 0 : index
    %76 = vector.load %arg4[%c0_27, %c0_28] : memref<32x32xbf16, #tpu.memory_space<vmem>>, vector<32x32xbf16>
    %cst_29 = arith.constant dense<0.000000e+00> : vector<8x32xf32>
    %77 = tpu.matmul %75, %76, %cst_29 {dimension_numbers = #tpu.dot_dimension_numbers<[1], [0], [0], [1], [0, 0, 1, 1], [], []>} : vector<8x32xbf16>, vector<32x32xbf16>, vector<8x32xf32> -> vector<8x32xf32>
    %78 = arith.addf %4, %77 : vector<8x32xf32>
    %79 = arith.mulf %78, %78 : vector<8x32xf32>
    %cst_30 = arith.constant dense<0.000000e+00> : vector<8xf32>
    %80 = vector.multi_reduction <add>, %79, %cst_30 [1] : vector<8x32xf32> to vector<8xf32>
    %81 = vector.shape_cast %80 : vector<8xf32> to vector<8x1xf32>
    %cst_31 = arith.constant 3.200000e+01 : f32
    %82 = vector.broadcast %cst_31 : f32 to vector<8x1xf32>
    %83 = arith.divf %81, %82 : vector<8x1xf32>
    %cst_32 = arith.constant 9.99999997E-7 : f32
    %84 = vector.broadcast %cst_32 : f32 to vector<8x1xf32>
    %85 = arith.addf %83, %84 : vector<8x1xf32>
    %86 = math.rsqrt %85 : vector<8x1xf32>
    %87 = vector.broadcast %86 : vector<8x1xf32> to vector<8x32xf32>
    %88 = arith.mulf %78, %87 : vector<8x32xf32>
    %89 = arith.truncf %88 : vector<8x32xf32> to vector<8x32xbf16>
    %c0_33 = arith.constant 0 : index
    %c0_34 = arith.constant 0 : index
    %90 = vector.load %arg5[%c0_33, %c0_34] : memref<32x32xbf16, #tpu.memory_space<vmem>>, vector<32x32xbf16>
    %cst_35 = arith.constant dense<0.000000e+00> : vector<8x32xf32>
    %91 = tpu.matmul %89, %90, %cst_35 {dimension_numbers = #tpu.dot_dimension_numbers<[1], [0], [0], [1], [0, 0, 1, 1], [], []>} : vector<8x32xbf16>, vector<32x32xbf16>, vector<8x32xf32> -> vector<8x32xf32>
    %c0_36 = arith.constant 0 : index
    %c0_37 = arith.constant 0 : index
    %92 = vector.load %arg6[%c0_36, %c0_37] : memref<32x32xbf16, #tpu.memory_space<vmem>>, vector<32x32xbf16>
    %cst_38 = arith.constant dense<0.000000e+00> : vector<8x32xf32>
    %93 = tpu.matmul %89, %92, %cst_38 {dimension_numbers = #tpu.dot_dimension_numbers<[1], [0], [0], [1], [0, 0, 1, 1], [], []>} : vector<8x32xbf16>, vector<32x32xbf16>, vector<8x32xf32> -> vector<8x32xf32>
    %94 = arith.mulf %91, %93 : vector<8x32xf32>
    %95 = arith.truncf %94 : vector<8x32xf32> to vector<8x32xbf16>
    %c0_39 = arith.constant 0 : index
    %c0_40 = arith.constant 0 : index
    %96 = vector.load %arg7[%c0_39, %c0_40] : memref<32x32xbf16, #tpu.memory_space<vmem>>, vector<32x32xbf16>
    %cst_41 = arith.constant dense<0.000000e+00> : vector<8x32xf32>
    %97 = tpu.matmul %95, %96, %cst_41 {dimension_numbers = #tpu.dot_dimension_numbers<[1], [0], [0], [1], [0, 0, 1, 1], [], []>} : vector<8x32xbf16>, vector<32x32xbf16>, vector<8x32xf32> -> vector<8x32xf32>
    %98 = arith.addf %78, %97 : vector<8x32xf32>
    %c0_42 = arith.constant 0 : index
    %c0_43 = arith.constant 0 : index
    %c0_44 = arith.constant 0 : index
    %99 = vector.load %arg8[%c0_42, %c0_43, %c0_44] : memref<1x8x32xf32, #tpu.memory_space<vmem>>, vector<1x8x32xf32>
    %100 = vector.shape_cast %99 : vector<1x8x32xf32> to vector<8x32xf32>
    %101 = vector.shape_cast %98 : vector<8x32xf32> to vector<1x8x32xf32>
    tpu.vector_store %arg8[%c0_42, %c0_43, %c0_44], %101 {strides = array<i32>} : memref<1x8x32xf32, #tpu.memory_space<vmem>>, vector<1x8x32xf32>,
    return
  }
  func.func @transform_0(%arg0: i32, %arg1: i32) -> (i32, i32, i32) {
    %c0_i32 = arith.constant 0 : i32
    %c0_i32_0 = arith.constant 0 : i32
    return %arg0, %arg1, %c0_i32 : i32, i32, i32
  }
  func.func @transform_1(%arg0: i32, %arg1: i32) -> (i32, i32) {
    %c0_i32 = arith.constant 0 : i32
    %c0_i32_0 = arith.constant 0 : i32
    %c0_i32_1 = arith.constant 0 : i32
    return %c0_i32, %c0_i32_0 : i32, i32
  }
  func.func @transform_2(%arg0: i32, %arg1: i32) -> (i32, i32) {
    %c0_i32 = arith.constant 0 : i32
    %c0_i32_0 = arith.constant 0 : i32
    %c0_i32_1 = arith.constant 0 : i32
    return %c0_i32, %c0_i32_0 : i32, i32
  }
  func.func @transform_3(%arg0: i32, %arg1: i32) -> (i32, i32) {
    %c0_i32 = arith.constant 0 : i32
    %c0_i32_0 = arith.constant 0 : i32
    %c0_i32_1 = arith.constant 0 : i32
    return %c0_i32, %c0_i32_0 : i32, i32
  }
  func.func @transform_4(%arg0: i32, %arg1: i32) -> (i32, i32) {
    %c0_i32 = arith.constant 0 : i32
    %c0_i32_0 = arith.constant 0 : i32
    %c0_i32_1 = arith.constant 0 : i32
    return %c0_i32, %c0_i32_0 : i32, i32
  }
  func.func @transform_5(%arg0: i32, %arg1: i32) -> (i32, i32) {
    %c0_i32 = arith.constant 0 : i32
    %c0_i32_0 = arith.constant 0 : i32
    %c0_i32_1 = arith.constant 0 : i32
    return %c0_i32, %c0_i32_0 : i32, i32
  }
  func.func @transform_6(%arg0: i32, %arg1: i32) -> (i32, i32, i32) {
    %c0_i32 = arith.constant 0 : i32
    %c0_i32_0 = arith.constant 0 : i32
    return %arg0, %arg1, %c0_i32 : i32, i32, i32
  }
}

</mosaic_0001>

<llo_original>
// kernel: transnormer_decoder_layer.1
$region0: #{transnormer_decoder_layer.1}
  #allocation0 [shape = 'u32[]', space=smem, size = 0x4, offset = 0x4, fixed_abs, tag = 'smem constant byte address 0x4 - core index']
  #allocation1 [shape = 'u32[144,128]{1,0:T(1,128)}', space=vmem, size = 0x12000, scoped, tag = 'internal scratch']
  #allocation2 [shape = 'f32[4,8,8]{2,1,0:T(8,128)}', space=vmem, size = 0x4000, scoped, tag = 'scratch operand']
  %s0 = inlined_call_operand.vmem [shape: f32[2,16,32], index: 0, kind: input, shape index: {}]
  %s1 = inlined_call_operand.vmem [shape: bf16[32,128], index: 1, kind: input, shape index: {}]
  %s2 = inlined_call_operand.vmem [shape: bf16[32,32], index: 2, kind: input, shape index: {}]
  %s3 = inlined_call_operand.vmem [shape: bf16[32,32], index: 3, kind: input, shape index: {}]
  %s4 = inlined_call_operand.vmem [shape: bf16[32,32], index: 4, kind: input, shape index: {}]
  %s5 = inlined_call_operand.vmem [shape: bf16[32,32], index: 5, kind: input, shape index: {}]
  %s6 = inlined_call_operand.hbm [shape: f32[2,16,32], index: 6, kind: output, shape index: {}]
  %s7 = sld [smem:[#allocation0]]
  $region61: #{transnormer_decoder_layer.1} parent=0
    _
  %s9 = ssub.s32 1, %s7
  %s10 = scalar_select 0, %s9, %s7
  $region1: #{transnormer_decoder_layer.1} parent=0
    #allocation3 [shape = 'u8[8192]{0}', space=vmem, size = 0x2000, scoped, tag = 'output window, operand 0']
    #allocation4 [shape = 's32[2]{0}', space=sflag, size = 0x8, scoped, tag = 'scoped memory for transnormer_decoder_layer.1']
    %11 = vsyncpa [#allocation4], 0
    %s12 = scalar_lea.sflag [#allocation4], 1
    %13 = vsyncpa %s12, 0
    loop: start=0, step=1, limit=6
    $region2: #{transnormer_decoder_layer.1} parent=1 // loop_pre_header
      _
    $region3: #{transnormer_decoder_layer.1} parent=1 // loop_header
      %s15 = sphi 0, %s19
      %p16 = scmp.ge.s32.totalorder %s15, 6
      %s22 = sphi 0, %s34
      %s23 = sphi 0, %s30
      %s24 = sphi 0, %s22
      %s25 = sphi 0, %s23
      %s26 = sphi 0, %s24
      %s27 = sphi 0, %s25
      %s39 = sphi 0, %s41
      %s42 = sphi 0, %s39
      %s43 = sphi 0, %s42
      %s59 = sphi 0, %s43
      %s63 = sphi 0, %s63
      %s65 = sphi 0, %s63
      %s66 = sphi 0, %s65
      %s80 = sphi 0, %s66
      %s84 = sphi 0, %s84
      %s86 = sphi 0, %s84
      %s87 = sphi 0, %s86
      %s101 = sphi 0, %s87
      %s105 = sphi 0, %s105
      %s107 = sphi 0, %s105
      %s108 = sphi 0, %s107
      %s122 = sphi 0, %s108
      %s126 = sphi 0, %s126
      %s128 = sphi 0, %s126
      %s129 = sphi 0, %s128
      %s143 = sphi 0, %s129
      %s147 = sphi 0, %s147
      %s149 = sphi 0, %s147
      %s150 = sphi 0, %s149
      %s164 = sphi 0, %s150
      %s172 = sphi 0, %s174
      %s175 = sphi 0, %s172
      %s176 = sphi 0, %s175
      %s192 = sphi 0, %s176
    $region4: #{transnormer_decoder_layer.1} parent=1 // loop_header_branch
      %18 = sbr.rel (%p16) target = $region8
    $region5: #{transnormer_decoder_layer.1} parent=1 // loop_body
      %s20 = ssub.s32 %s15, 1
      %s21 = ssub.s32 %s15, 2
      %s28 = sadd.s32 1, %s23
      %p29 = scmp.ge.s32.totalorder %s28, 2
      %s30 = scalar_select %p29, 0, %s28
      %s31 = sadd.s32 1, %s22
      %s32 = scalar_select %p29, %s31, %s22
      %p33 = scmp.ge.s32.totalorder %s32, 2
      %s34 = scalar_select %p33, 0, %s32
      %s35 = ssub.s32 %s22, %s34
      %s36 = ssub.s32 %s23, %s30
      %s37 = sor.u32 %s35, %s36
      %p38 = scmp.eq.s32.totalorder %s37, 0
      %s40 = sadd.s32 %s39, 1
      %s41 = scalar_select %p38, %s39, %s40
      %p44 = pneg %p38
      %p45 = scmp.eq.s32.totalorder %s15, 3
      %p46 = por %p44, %p45
      %p47 = scmp.ne.s32.totalorder %s39, %s42
      %p48 = scmp.eq.s32.totalorder %s15, 0
      %p49 = por %p47, %p48
      %p50 = scmp.ne.s32.totalorder %s39, %s42
      %p51 = scmp.eq.s32.totalorder %s20, 3
      %p52 = por %p50, %p51
      %p53 = scmp.ne.s32.totalorder %s42, %s43
      %p54 = scmp.eq.s32.totalorder %s20, 0
      %p55 = por %p53, %p54
      %p56 = scmp.ne.s32.totalorder %s42, %s43
      %p57 = scmp.eq.s32.totalorder %s21, 3
      %p58 = por %p56, %p57
      %p60 = scmp.ne.s32.totalorder %s43, %s59
      %p61 = scmp.eq.s32.totalorder %s21, 0
      %p62 = por %p60, %p61
      %s64 = sadd.s32 %s63, 1
      %p67 = scmp.eq.s32.totalorder %s15, 3
      %p68 = scmp.ne.s32.totalorder %s63, %s65
      %p69 = scmp.eq.s32.totalorder %s15, 0
      %p70 = por %p68, %p69
      %p71 = scmp.ne.s32.totalorder %s63, %s65
      %p72 = scmp.eq.s32.totalorder %s20, 3
      %p73 = por %p71, %p72
      %p74 = scmp.ne.s32.totalorder %s65, %s66
      %p75 = scmp.eq.s32.totalorder %s20, 0
      %p76 = por %p74, %p75
      %p77 = scmp.ne.s32.totalorder %s65, %s66
      %p78 = scmp.eq.s32.totalorder %s21, 3
      %p79 = por %p77, %p78
      %p81 = scmp.ne.s32.totalorder %s66, %s80
      %p82 = scmp.eq.s32.totalorder %s21, 0
      %p83 = por %p81, %p82
      %s85 = sadd.s32 %s84, 1
      %p88 = scmp.eq.s32.totalorder %s15, 3
      %p89 = scmp.ne.s32.totalorder %s84, %s86
      %p90 = scmp.eq.s32.totalorder %s15, 0
      %p91 = por %p89, %p90
      %p92 = scmp.ne.s32.totalorder %s84, %s86
      %p93 = scmp.eq.s32.totalorder %s20, 3
      %p94 = por %p92, %p93
      %p95 = scmp.ne.s32.totalorder %s86, %s87
      %p96 = scmp.eq.s32.totalorder %s20, 0
      %p97 = por %p95, %p96
      %p98 = scmp.ne.s32.totalorder %s86, %s87
      %p99 = scmp.eq.s32.totalorder %s21, 3
      %p100 = por %p98, %p99
      %p102 = scmp.ne.s32.totalorder %s87, %s101
      %p103 = scmp.eq.s32.totalorder %s21, 0
      %p104 = por %p102, %p103
      %s106 = sadd.s32 %s105, 1
      %p109 = scmp.eq.s32.totalorder %s15, 3
      %p110 = scmp.ne.s32.totalorder %s105, %s107
      %p111 = scmp.eq.s32.totalorder %s15, 0
      %p112 = por %p110, %p111
      %p113 = scmp.ne.s32.totalorder %s105, %s107
      %p114 = scmp.eq.s32.totalorder %s20, 3
      %p115 = por %p113, %p114
      %p116 = scmp.ne.s32.totalorder %s107, %s108
      %p117 = scmp.eq.s32.totalorder %s20, 0
      %p118 = por %p116, %p117
      %p119 = scmp.ne.s32.totalorder %s107, %s108
      %p120 = scmp.eq.s32.totalorder %s21, 3
      %p121 = por %p119, %p120
      %p123 = scmp.ne.s32.totalorder %s108, %s122
      %p124 = scmp.eq.s32.totalorder %s21, 0
      %p125 = por %p123, %p124
      %s127 = sadd.s32 %s126, 1
      %p130 = scmp.eq.s32.totalorder %s15, 3
      %p131 = scmp.ne.s32.totalorder %s126, %s128
      %p132 = scmp.eq.s32.totalorder %s15, 0
      %p133 = por %p131, %p132
      %p134 = scmp.ne.s32.totalorder %s126, %s128
      %p135 = scmp.eq.s32.totalorder %s20, 3
      %p136 = por %p134, %p135
      %p137 = scmp.ne.s32.totalorder %s128, %s129
      %p138 = scmp.eq.s32.totalorder %s20, 0
      %p139 = por %p137, %p138
      %p140 = scmp.ne.s32.totalorder %s128, %s129
      %p141 = scmp.eq.s32.totalorder %s21, 3
      %p142 = por %p140, %p141
      %p144 = scmp.ne.s32.totalorder %s129, %s143
      %p145 = scmp.eq.s32.totalorder %s21, 0
      %p146 = por %p144, %p145
      %s148 = sadd.s32 %s147, 1
      %p151 = scmp.eq.s32.totalorder %s15, 3
      %p152 = scmp.ne.s32.totalorder %s147, %s149
      %p153 = scmp.eq.s32.totalorder %s15, 0
      %p154 = por %p152, %p153
      %p155 = scmp.ne.s32.totalorder %s147, %s149
      %p156 = scmp.eq.s32.totalorder %s20, 3
      %p157 = por %p155, %p156
      %p158 = scmp.ne.s32.totalorder %s149, %s150
      %p159 = scmp.eq.s32.totalorder %s20, 0
      %p160 = por %p158, %p159
      %p161 = scmp.ne.s32.totalorder %s149, %s150
      %p162 = scmp.eq.s32.totalorder %s21, 3
      %p163 = por %p161, %p162
      %p165 = scmp.ne.s32.totalorder %s150, %s164
      %p166 = scmp.eq.s32.totalorder %s21, 0
      %p167 = por %p165, %p166
      %s168 = ssub.s32 %s22, %s34
      %s169 = ssub.s32 %s23, %s30
      %s170 = sor.u32 %s168, %s169
      %p171 = scmp.eq.s32.totalorder %s170, 0
      %s173 = sadd.s32 %s172, 1
      %s174 = scalar_select %p171, %s172, %s173
      %p177 = pneg %p171
      %p178 = scmp.eq.s32.totalorder %s15, 3
      %p179 = por %p177, %p178
      %p180 = scmp.ne.s32.totalorder %s172, %s175
      %p181 = scmp.eq.s32.totalorder %s15, 0
      %p182 = por %p180, %p181
      %p183 = scmp.ne.s32.totalorder %s172, %s175
      %p184 = scmp.eq.s32.totalorder %s20, 3
      %p185 = por %p183, %p184
      %p186 = scmp.ne.s32.totalorder %s175, %s176
      %p187 = scmp.eq.s32.totalorder %s20, 0
      %p188 = por %p186, %p187
      %p189 = scmp.ne.s32.totalorder %s175, %s176
      %p190 = scmp.eq.s32.totalorder %s21, 3
      %p191 = por %p189, %p190
      %p193 = scmp.ne.s32.totalorder %s176, %s192
      %p194 = scmp.eq.s32.totalorder %s21, 0
      %p195 = por %p193, %p194
      %p196 = scmp.le.s32.totalorder 1, %s15
      %p197 = scmp.lt.s32.totalorder %s15, 5
      %p198 = pnand %p196, %p197
      %p199 = pneg %p198
      // Predicated region
      $region9: #{transnormer_decoder_layer.1} parent=5 // pred_check
        _
      $region10: #{transnormer_decoder_layer.1} parent=5 // pred_check_branch
        %201 = sbr.rel (%p198) target = $region12
      $region11: #{transnormer_decoder_layer.1} parent=5 // pred_region
        %s202 = ssub.s32 %s15, 1
        // Predicated region
        $region13: #{transnormer_decoder_layer.1} parent=11 // pred_check
          %p203 = pneg %p76
        $region14: #{transnormer_decoder_layer.1} parent=11 // pred_check_branch
          %205 = sbr.rel (%p203) target = $region16
        $region15: #{transnormer_decoder_layer.1} parent=11 // pred_region
          _
        $region16: #{transnormer_decoder_layer.1} parent=11 // pred_fallthru
          _
        // Predicated region
        $region17: #{transnormer_decoder_layer.1} parent=11 // pred_check
          %p206 = pneg %p97
        $region18: #{transnormer_decoder_layer.1} parent=11 // pred_check_branch
          %208 = sbr.rel (%p206) target = $region20
        $region19: #{transnormer_decoder_layer.1} parent=11 // pred_region
          _
        $region20: #{transnormer_decoder_layer.1} parent=11 // pred_fallthru
          _
        // Predicated region
        $region21: #{transnormer_decoder_layer.1} parent=11 // pred_check
          %p209 = pneg %p118
        $region22: #{transnormer_decoder_layer.1} parent=11 // pred_check_branch
          %211 = sbr.rel (%p209) target = $region24
        $region23: #{transnormer_decoder_layer.1} parent=11 // pred_region
          _
        $region24: #{transnormer_decoder_layer.1} parent=11 // pred_fallthru
          _
        // Predicated region
        $region25: #{transnormer_decoder_layer.1} parent=11 // pred_check
          %p212 = pneg %p139
        $region26: #{transnormer_decoder_layer.1} parent=11 // pred_check_branch
          %214 = sbr.rel (%p212) target = $region28
        $region27: #{transnormer_decoder_layer.1} parent=11 // pred_region
          _
        $region28: #{transnormer_decoder_layer.1} parent=11 // pred_fallthru
          _
        // Predicated region
        $region29: #{transnormer_decoder_layer.1} parent=11 // pred_check
          %p215 = pneg %p160
        $region30: #{transnormer_decoder_layer.1} parent=11 // pred_check_branch
          %217 = sbr.rel (%p215) target = $region32
        $region31: #{transnormer_decoder_layer.1} parent=11 // pred_region
          _
        $region32: #{transnormer_decoder_layer.1} parent=11 // pred_fallthru
          _
      $region12: #{transnormer_decoder_layer.1} parent=5 // pred_fallthru
        _
      %p218 = scmp.lt.s32.totalorder %s15, 4
      // Predicated region
      $region33: #{transnormer_decoder_layer.1} parent=5 // pred_check
        %p219 = pneg %p218
      $region34: #{transnormer_decoder_layer.1} parent=5 // pred_check_branch
        %221 = sbr.rel (%p219) target = $region36
      $region35: #{transnormer_decoder_layer.1} parent=5 // pred_region
        // Predicated region
        $region37: #{transnormer_decoder_layer.1} parent=35 // pred_check
          %p222 = pneg %p49
        $region38: #{transnormer_decoder_layer.1} parent=35 // pred_check_branch
          %224 = sbr.rel (%p222) target = $region40
        $region39: #{transnormer_decoder_layer.1} parent=35 // pred_region
          %p225 = scmp.lt.s32.totalorder %s22, 1
          %s226 = scalar_select %p225, %s22, 1
          %p227 = scmp.lt.s32.totalorder %s23, 1
          %s228 = scalar_select %p227, %s23, 1
          %s229 = smul.addr %s226, 2
          %s230 = sadd.s32 %s228, %s229
          %s231 = smul.addr %s230, 8
          %s232 = scalar_lea.vmem %s0, %s231
        $region40: #{transnormer_decoder_layer.1} parent=35 // pred_fallthru
          _
      $region36: #{transnormer_decoder_layer.1} parent=5 // pred_fallthru
        _
      %p233 = scmp.le.s32.totalorder 1, %s15
      %p234 = scmp.lt.s32.totalorder %s15, 5
      %p235 = pnand %p233, %p234
      %p236 = pneg %p235
      // Predicated region
      $region41: #{transnormer_decoder_layer.1} parent=5 // pred_check
        _
      $region42: #{transnormer_decoder_layer.1} parent=5 // pred_check_branch
        %238 = sbr.rel (%p235) target = $region44
      $region43: #{transnormer_decoder_layer.1} parent=5 // pred_region
        %s239 = ssub.s32 %s15, 1
        %p240 = scmp.lt.s32.totalorder %s24, 1
        %s241 = scalar_select %p240, %s24, 1
        %p242 = scmp.lt.s32.totalorder %s25, 1
        %s243 = scalar_select %p242, %s25, 1
        %s244 = smul.addr %s241, 2
        %s245 = sadd.s32 %s243, %s244
        %s246 = smul.addr %s245, 8
        %s247 = scalar_lea.vmem %s0, %s246
        %p248 = pneg %p55
        %p249 = pneg %p52
        %p250 = pneg %p76
        %p251 = pneg %p73
        %p252 = pneg %p97
        %p253 = pneg %p94
        %p254 = pneg %p118
        %p255 = pneg %p115
        %p256 = pneg %p139
        %p257 = pneg %p136
        %p258 = pneg %p160
        %p259 = pneg %p157
        %p260 = pneg %p188
        %p261 = pneg %p185
        %s262 = sand.u32 %s175, 1
        %s263 = scalar_lea.sflag [#allocation4], %s262
        %s264 = sand.u32 %s175, 1
        %s265 = smul.addr %s264, 8
        %s266 = scalar_lea.vmem [#allocation3], %s265
        %p267 = scmp.lt.s32.totalorder %s24, 1
        %s268 = scalar_select %p267, %s24, 1
        %p269 = scmp.lt.s32.totalorder %s25, 1
        %s270 = scalar_select %p269, %s25, 1
        %s271 = smul.addr %s268, 2
        %s272 = sadd.s32 %s270, %s271
        %s273 = smul.addr %s272, 8
        %s274 = scalar_lea.vmem %s0, %s273
        %p276 = scmp.eq.s32.totalorder %s25, 0
        // Predicated region
        $region45: #{transnormer_decoder_layer.1} parent=43 // pred_check
          %p277 = pneg %p276
        $region46: #{transnormer_decoder_layer.1} parent=43 // pred_check_branch
          %279 = sbr.rel (%p277) target = $region48
        $region47: #{transnormer_decoder_layer.1} parent=43 // pred_region
          %vm280 = vcmask 64512
          %281 = vst.msk [vmem:[#allocation2] sm:$0xff] %vm280, 0.0
          %282 = vst.msk [vmem:[#allocation2 + $0x8] sm:$0xff] %vm280, 0.0
          %283 = vst.msk [vmem:[#allocation2 + $0x10] sm:$0xff] %vm280, 0.0
          %284 = vst.msk [vmem:[#allocation2 + $0x18] sm:$0xff] %vm280, 0.0
        $region48: #{transnormer_decoder_layer.1} parent=43 // pred_fallthru
          _
        %v285 = vld [vmem:[%s274] sm:$0xff]
        %v286 = vmul.f32 %v285, %v285
        %vm287 = vcmask 261120
        %v288 = vsel %vm287, %v286, 0.0
        %289 = vadd.xlane.f32.xlu0 %v288
        %v290 = vpop.xlane.xlu0 %289
        %v291 = vrcp.pop 32.0
        %v292 = vmul.f32 %v290, %v291
        %v293 = vadd.f32 %v292, 1e-06
        %v294 = vrsqrt.pop %v293
        %v295 = vmul.f32 %v285, %v294
        %v296 = vpack.c.bf16 %v295, %v295
        %v297 = vld [vmem:[%s1] sm:$0xf]
        %v298 = vld [vmem:[%s1 + $0x4] sm:$0xf]
        %v299 = vld [vmem:[%s1 + $0x8] sm:$0xf]
        %v300 = vld [vmem:[%s1 + $0xc] sm:$0xf]
        %v305 = vunpack.c.l.b16 %v297
        %v306 = vunpack.c.l.b16 %v298
        %v307 = vunpack.c.l.b16 %v299
        %v308 = vunpack.c.l.b16 %v300
        %v309 = vpack.c.b16 %v306, %v305
        %v310 = vpack.c.b16 %v308, %v307
        %v314 = vsel %vm287, %v296, 0
        %316 = vmatprep.subr.bf16.mxu0 0
        %317 = vmatpush1.bf16.msra.mxu0 0
        %318 = vmatprep.subr.bf16.mxu0 0
        %319 = vmatpush1.bf16.msra.mxu0 0
        %320 = vmatprep.subr.bf16.mxu0 0
        %321 = vmatpush1.bf16.msra.mxu0 0
        %322 = vmatprep.subr.bf16.mxu0 0
        %323 = vmatpush1.bf16.msra.mxu0 0
        %324 = vmatprep.subr.bf16.mxu0 0
        %325 = vmatpush1.bf16.msra.mxu0 0
        %326 = vmatprep.subr.bf16.mxu0 0
        %327 = vmatpush1.bf16.msra.mxu0 0
        %328 = vmatprep.subr.bf16.mxu0 0
        %329 = vmatpush1.bf16.msra.mxu0 %v310
        %330 = vmatprep.subr.bf16.mxu0 0
        %331 = vmatpush1.bf16.msra.mxu0 %v309
        %332 = vmatprep.subr.bf16.mxu0 0
        %333 = vmatpush2.bf16.msra.mxu0 0
        %334 = vmatprep.subr.bf16.mxu0 0
        %335 = vmatpush2.bf16.msra.mxu0 0
        %336 = vmatprep.subr.bf16.mxu0 0
        %337 = vmatpush2.bf16.msra.mxu0 0
        %338 = vmatprep.subr.bf16.mxu0 0
        %339 = vmatpush2.bf16.msra.mxu0 0
        %340 = vmatprep.subr.bf16.mxu0 0
        %341 = vmatpush2.bf16.msra.mxu0 0
        %342 = vmatprep.subr.bf16.mxu0 0
        %343 = vmatpush2.bf16.msra.mxu0 0
        %344 = vmatprep.subr.bf16.mxu0 0
        %345 = vmatpush2.bf16.msra.mxu0 0
        %346 = vmatprep.subr.bf16.mxu0 0
        %347 = vmatpush2.bf16.msra.mxu0 0
        %348 = vmatprep.mubr.bf16.mxu0 0
        %349 = vmatmul.mubr.bf16.gmra.mxu0 %v314
        %v350 = vpop.f32.mrf.mxu0
        %v351 = vadd.f32 0.0, %v350
        %v352 = vpop.f32.mrf.mxu0
        %v353 = vpop.f32.mrf.mxu0
        %v354 = vpop.f32.mrf.mxu0
        %355 = vdwg.mxu0
        %v356 = vxor.u32 %v351, 2147483648
        %v357 = vmul.f32 %v356, 1.442695
        %v358 = vpow.pop %v357
        %v359 = vadd.f32 %v358, 1.0
        %v360 = vrcp.pop %v359
        %v361 = vmul.f32 1.0, %v360
        %v362 = vmul.f32 %v351, %v361
        %364 = vrot.lane.b32.xlu0 %v362, 120
        %v365 = vpop.permute.xlu0 %364
        %367 = vrot.lane.b32.xlu0 %v362, 112
        %v368 = vpop.permute.xlu0 %367
        %370 = vrot.lane.b32.xlu0 %v362, 104
        %v371 = vpop.permute.xlu0 %370
        %v373 = vcombine.low %v362, %v368
        %v374 = vcombine.high %v362, %v368
        %v376 = vunpack.c.l.s4 1983009808
        %v377 = vunpack.c.0.s8 %v376
        %v378 = vlaneseq
        %v379 = vshrl.u32 %v378, 7
        %v380 = vsub.s32 %v377, %v379
        %v381 = vrot.slane %v373, %v380
        %v383 = vunpack.c.l.s4 1983009808
        %v384 = vunpack.c.0.s8 %v383
        %v385 = vlaneseq
        %v386 = vshrl.u32 %v385, 7
        %v387 = vsub.s32 %v384, %v386
        %v388 = vrot.slane %v374, %v387
        %v389 = vcombine.low %v365, %v371
        %v390 = vcombine.high %v365, %v371
        %v392 = vunpack.c.l.s4 1983009808
        %v393 = vunpack.c.0.s8 %v392
        %v394 = vlaneseq
        %v395 = vshrl.u32 %v394, 7
        %v396 = vsub.s32 %v393, %v395
        %v397 = vrot.slane %v389, %v396
        %v399 = vunpack.c.l.s4 1983009808
        %v400 = vunpack.c.0.s8 %v399
        %v401 = vlaneseq
        %v402 = vshrl.u32 %v401, 7
        %v403 = vsub.s32 %v400, %v402
        %v404 = vrot.slane %v390, %v403
        %v405 = vcombine.low %v381, %v397
        %v406 = vcombine.high %v381, %v397
        %v408 = vunpack.c.l.s4 1934713408
        %v409 = vunpack.c.0.s8 %v408
        %v410 = vlaneseq
        %v411 = vshrl.u32 %v410, 7
        %v412 = vsub.s32 %v409, %v411
        %v413 = vrot.slane %v405, %v412
        %v415 = vunpack.c.l.s4 1934713408
        %v416 = vunpack.c.0.s8 %v415
        %v417 = vlaneseq
        %v418 = vshrl.u32 %v417, 7
        %v419 = vsub.s32 %v416, %v418
        %v420 = vrot.slane %v406, %v419
        %v421 = vcombine.low %v388, %v404
        %v422 = vcombine.high %v388, %v404
        %v424 = vunpack.c.l.s4 1934713408
        %v425 = vunpack.c.0.s8 %v424
        %v426 = vlaneseq
        %v427 = vshrl.u32 %v426, 7
        %v428 = vsub.s32 %v425, %v427
        %v429 = vrot.slane %v421, %v428
        %v431 = vunpack.c.l.s4 1934713408
        %v432 = vunpack.c.0.s8 %v431
        %v433 = vlaneseq
        %v434 = vshrl.u32 %v433, 7
        %v435 = vsub.s32 %v432, %v434
        %v436 = vrot.slane %v422, %v435
        %v437 = vcombine.high %v413, 0.0
        %v438 = vcombine.high %v420, 0.0
        %v439 = vcombine.high %v429, 0.0
        %v440 = vcombine.high %v436, 0.0
        %v441 = vcombine.low %v413, %v420
        %v443 = vunpack.c.l.s4 1983009808
        %v444 = vunpack.c.0.s8 %v443
        %v445 = vlaneseq
        %v446 = vshrl.u32 %v445, 7
        %v447 = vsub.s32 %v444, %v446
        %v448 = vrot.slane %v441, %v447
        %v449 = vcombine.low %v437, %v438
        %v451 = vunpack.c.l.s4 1983009808
        %v452 = vunpack.c.0.s8 %v451
        %v453 = vlaneseq
        %v454 = vshrl.u32 %v453, 7
        %v455 = vsub.s32 %v452, %v454
        %v456 = vrot.slane %v449, %v455
        %v457 = vcombine.low %v429, %v436
        %v459 = vunpack.c.l.s4 1983009808
        %v460 = vunpack.c.0.s8 %v459
        %v461 = vlaneseq
        %v462 = vshrl.u32 %v461, 7
        %v463 = vsub.s32 %v460, %v462
        %v464 = vrot.slane %v457, %v463
        %v465 = vcombine.low %v439, %v440
        %v467 = vunpack.c.l.s4 1983009808
        %v468 = vunpack.c.0.s8 %v467
        %v469 = vlaneseq
        %v470 = vshrl.u32 %v469, 7
        %v471 = vsub.s32 %v468, %v470
        %v472 = vrot.slane %v465, %v471
        %v473 = vcombine.low %v448, %v456
        %v474 = vcombine.high %v448, %v456
        %v476 = vunpack.c.l.s4 1934713408
        %v477 = vunpack.c.0.s8 %v476
        %v478 = vlaneseq
        %v479 = vshrl.u32 %v478, 7
        %v480 = vsub.s32 %v477, %v479
        %v481 = vrot.slane %v473, %v480
        %v483 = vunpack.c.l.s4 1934713408
        %v484 = vunpack.c.0.s8 %v483
        %v485 = vlaneseq
        %v486 = vshrl.u32 %v485, 7
        %v487 = vsub.s32 %v484, %v486
        %v488 = vrot.slane %v474, %v487
        %v489 = vcombine.low %v464, %v472
        %v490 = vcombine.high %v464, %v472
        %v492 = vunpack.c.l.s4 1934713408
        %v493 = vunpack.c.0.s8 %v492
        %v494 = vlaneseq
        %v495 = vshrl.u32 %v494, 7
        %v496 = vsub.s32 %v493, %v495
        %v497 = vrot.slane %v489, %v496
        %v499 = vunpack.c.l.s4 1934713408
        %v500 = vunpack.c.0.s8 %v499
        %v501 = vlaneseq
        %v502 = vshrl.u32 %v501, 7
        %v503 = vsub.s32 %v500, %v502
        %v504 = vrot.slane %v490, %v503
        %v505 = vcombine.low %v481, %v497
        %v506 = vcombine.high %v481, %v497
        %v507 = vcombine.low %v488, %v504
        %v508 = vcombine.high %v488, %v504
        %509 = vrot.lane.b32.xlu0 %v362, 96
        %v510 = vpop.permute.xlu0 %509
        %511 = vrot.lane.b32.xlu0 %v365, 96
        %v512 = vpop.permute.xlu0 %511
        %513 = vrot.lane.b32.xlu0 %v368, 96
        %v514 = vpop.permute.xlu0 %513
        %515 = vrot.lane.b32.xlu0 %v371, 96
        %v516 = vpop.permute.xlu0 %515
        %v521 = vcombine.low %v510, %v514
        %v522 = vcombine.high %v510, %v514
        %v524 = vunpack.c.l.s4 1983009808
        %v525 = vunpack.c.0.s8 %v524
        %v526 = vlaneseq
        %v527 = vshrl.u32 %v526, 7
        %v528 = vsub.s32 %v525, %v527
        %v529 = vrot.slane %v521, %v528
        %v531 = vunpack.c.l.s4 1983009808
        %v532 = vunpack.c.0.s8 %v531
        %v533 = vlaneseq
        %v534 = vshrl.u32 %v533, 7
        %v535 = vsub.s32 %v532, %v534
        %v536 = vrot.slane %v522, %v535
        %v537 = vcombine.low %v512, %v516
        %v538 = vcombine.high %v512, %v516
        %v540 = vunpack.c.l.s4 1983009808
        %v541 = vunpack.c.0.s8 %v540
        %v542 = vlaneseq
        %v543 = vshrl.u32 %v542, 7
        %v544 = vsub.s32 %v541, %v543
        %v545 = vrot.slane %v537, %v544
        %v547 = vunpack.c.l.s4 1983009808
        %v548 = vunpack.c.0.s8 %v547
        %v549 = vlaneseq
        %v550 = vshrl.u32 %v549, 7
        %v551 = vsub.s32 %v548, %v550
        %v552 = vrot.slane %v538, %v551
        %v553 = vcombine.low %v529, %v545
        %v554 = vcombine.high %v529, %v545
        %v556 = vunpack.c.l.s4 1934713408
        %v557 = vunpack.c.0.s8 %v556
        %v558 = vlaneseq
        %v559 = vshrl.u32 %v558, 7
        %v560 = vsub.s32 %v557, %v559
        %v561 = vrot.slane %v553, %v560
        %v563 = vunpack.c.l.s4 1934713408
        %v564 = vunpack.c.0.s8 %v563
        %v565 = vlaneseq
        %v566 = vshrl.u32 %v565, 7
        %v567 = vsub.s32 %v564, %v566
        %v568 = vrot.slane %v554, %v567
        %v569 = vcombine.low %v536, %v552
        %v570 = vcombine.high %v536, %v552
        %v572 = vunpack.c.l.s4 1934713408
        %v573 = vunpack.c.0.s8 %v572
        %v574 = vlaneseq
        %v575 = vshrl.u32 %v574, 7
        %v576 = vsub.s32 %v573, %v575
        %v577 = vrot.slane %v569, %v576
        %v579 = vunpack.c.l.s4 1934713408
        %v580 = vunpack.c.0.s8 %v579
        %v581 = vlaneseq
        %v582 = vshrl.u32 %v581, 7
        %v583 = vsub.s32 %v580, %v582
        %v584 = vrot.slane %v570, %v583
        %v585 = vcombine.high %v561, 0.0
        %v586 = vcombine.high %v568, 0.0
        %v587 = vcombine.high %v577, 0.0
        %v588 = vcombine.high %v584, 0.0
        %589 = vxpose.xlu0.b32.start [1/16] %v561, 128
        %590 = vxpose.xlu0.b32.cont [2/16] 0.0, 128
        %591 = vxpose.xlu0.b32.cont [3/16] 0.0, 128
        %592 = vxpose.xlu0.b32.cont [4/16] 0.0, 128
        %593 = vxpose.xlu0.b32.cont [5/16] 0.0, 128
        %594 = vxpose.xlu0.b32.cont [6/16] 0.0, 128
        %595 = vxpose.xlu0.b32.cont [7/16] 0.0, 128
        %596 = vxpose.xlu0.b32.cont [8/16] 0.0, 128
        %597 = vxpose.xlu0.b32.cont [9/16] 0.0, 128
        %598 = vxpose.xlu0.b32.cont [10/16] 0.0, 128
        %599 = vxpose.xlu0.b32.cont [11/16] 0.0, 128
        %600 = vxpose.xlu0.b32.cont [12/16] 0.0, 128
        %601 = vxpose.xlu0.b32.cont [13/16] 0.0, 128
        %602 = vxpose.xlu0.b32.cont [14/16] 0.0, 128
        %603 = vxpose.xlu0.b32.cont [15/16] 0.0, 128
        %604 = vxpose.xlu0.b32.end [16/16] 0.0, 128
        %v605 = vpop.trf.xlu0
        %v606 = vpop.trf.xlu0
        %v607 = vpop.trf.xlu0
        %v608 = vpop.trf.xlu0
        %v609 = vpop.trf.xlu0
        %v610 = vpop.trf.xlu0
        %v611 = vpop.trf.xlu0
        %v612 = vpop.trf.xlu0
        %v613 = vpop.trf.xlu0
        %v614 = vpop.trf.xlu0
        %v615 = vpop.trf.xlu0
        %v616 = vpop.trf.xlu0
        %v617 = vpop.trf.xlu0
        %v618 = vpop.trf.xlu0
        %v619 = vpop.trf.xlu0
        %v620 = vpop.trf.xlu0
        %621 = vxpose.xlu0.b32.start [1/16] %v585, 128
        %622 = vxpose.xlu0.b32.cont [2/16] 0.0, 128
        %623 = vxpose.xlu0.b32.cont [3/16] 0.0, 128
        %624 = vxpose.xlu0.b32.cont [4/16] 0.0, 128
        %625 = vxpose.xlu0.b32.cont [5/16] 0.0, 128
        %626 = vxpose.xlu0.b32.cont [6/16] 0.0, 128
        %627 = vxpose.xlu0.b32.cont [7/16] 0.0, 128
        %628 = vxpose.xlu0.b32.cont [8/16] 0.0, 128
        %629 = vxpose.xlu0.b32.cont [9/16] 0.0, 128
        %630 = vxpose.xlu0.b32.cont [10/16] 0.0, 128
        %631 = vxpose.xlu0.b32.cont [11/16] 0.0, 128
        %632 = vxpose.xlu0.b32.cont [12/16] 0.0, 128
        %633 = vxpose.xlu0.b32.cont [13/16] 0.0, 128
        %634 = vxpose.xlu0.b32.cont [14/16] 0.0, 128
        %635 = vxpose.xlu0.b32.cont [15/16] 0.0, 128
        %636 = vxpose.xlu0.b32.end [16/16] 0.0, 128
        %v637 = vpop.trf.xlu0
        %v638 = vpop.trf.xlu0
        %v639 = vpop.trf.xlu0
        %v640 = vpop.trf.xlu0
        %v641 = vpop.trf.xlu0
        %v642 = vpop.trf.xlu0
        %v643 = vpop.trf.xlu0
        %v644 = vpop.trf.xlu0
        %v645 = vpop.trf.xlu0
        %v646 = vpop.trf.xlu0
        %v647 = vpop.trf.xlu0
        %v648 = vpop.trf.xlu0
        %v649 = vpop.trf.xlu0
        %v650 = vpop.trf.xlu0
        %v651 = vpop.trf.xlu0
        %v652 = vpop.trf.xlu0
        %653 = vxpose.xlu0.b32.start [1/16] %v568, 128
        %654 = vxpose.xlu0.b32.cont [2/16] 0.0, 128
        %655 = vxpose.xlu0.b32.cont [3/16] 0.0, 128
        %656 = vxpose.xlu0.b32.cont [4/16] 0.0, 128
        %657 = vxpose.xlu0.b32.cont [5/16] 0.0, 128
        %658 = vxpose.xlu0.b32.cont [6/16] 0.0, 128
        %659 = vxpose.xlu0.b32.cont [7/16] 0.0, 128
        %660 = vxpose.xlu0.b32.cont [8/16] 0.0, 128
        %661 = vxpose.xlu0.b32.cont [9/16] 0.0, 128
        %662 = vxpose.xlu0.b32.cont [10/16] 0.0, 128
        %663 = vxpose.xlu0.b32.cont [11/16] 0.0, 128
        %664 = vxpose.xlu0.b32.cont [12/16] 0.0, 128
        %665 = vxpose.xlu0.b32.cont [13/16] 0.0, 128
        %666 = vxpose.xlu0.b32.cont [14/16] 0.0, 128
        %667 = vxpose.xlu0.b32.cont [15/16] 0.0, 128
        %668 = vxpose.xlu0.b32.end [16/16] 0.0, 128
        %v669 = vpop.trf.xlu0
        %v670 = vpop.trf.xlu0
        %v671 = vpop.trf.xlu0
        %v672 = vpop.trf.xlu0
        %v673 = vpop.trf.xlu0
        %v674 = vpop.trf.xlu0
        %v675 = vpop.trf.xlu0
        %v676 = vpop.trf.xlu0
        %v677 = vpop.trf.xlu0
        %v678 = vpop.trf.xlu0
        %v679 = vpop.trf.xlu0
        %v680 = vpop.trf.xlu0
        %v681 = vpop.trf.xlu0
        %v682 = vpop.trf.xlu0
        %v683 = vpop.trf.xlu0
        %v684 = vpop.trf.xlu0
        %685 = vxpose.xlu0.b32.start [1/16] %v586, 128
        %686 = vxpose.xlu0.b32.cont [2/16] 0.0, 128
        %687 = vxpose.xlu0.b32.cont [3/16] 0.0, 128
        %688 = vxpose.xlu0.b32.cont [4/16] 0.0, 128
        %689 = vxpose.xlu0.b32.cont [5/16] 0.0, 128
        %690 = vxpose.xlu0.b32.cont [6/16] 0.0, 128
        %691 = vxpose.xlu0.b32.cont [7/16] 0.0, 128
        %692 = vxpose.xlu0.b32.cont [8/16] 0.0, 128
        %693 = vxpose.xlu0.b32.cont [9/16] 0.0, 128
        %694 = vxpose.xlu0.b32.cont [10/16] 0.0, 128
        %695 = vxpose.xlu0.b32.cont [11/16] 0.0, 128
        %696 = vxpose.xlu0.b32.cont [12/16] 0.0, 128
        %697 = vxpose.xlu0.b32.cont [13/16] 0.0, 128
        %698 = vxpose.xlu0.b32.cont [14/16] 0.0, 128
        %699 = vxpose.xlu0.b32.cont [15/16] 0.0, 128
        %700 = vxpose.xlu0.b32.end [16/16] 0.0, 128
        %v701 = vpop.trf.xlu0
        %v702 = vpop.trf.xlu0
        %v703 = vpop.trf.xlu0
        %v704 = vpop.trf.xlu0
        %v705 = vpop.trf.xlu0
        %v706 = vpop.trf.xlu0
        %v707 = vpop.trf.xlu0
        %v708 = vpop.trf.xlu0
        %v709 = vpop.trf.xlu0
        %v710 = vpop.trf.xlu0
        %v711 = vpop.trf.xlu0
        %v712 = vpop.trf.xlu0
        %v713 = vpop.trf.xlu0
        %v714 = vpop.trf.xlu0
        %v715 = vpop.trf.xlu0
        %v716 = vpop.trf.xlu0
        %717 = vxpose.xlu0.b32.start [1/16] %v577, 128
        %718 = vxpose.xlu0.b32.cont [2/16] 0.0, 128
        %719 = vxpose.xlu0.b32.cont [3/16] 0.0, 128
        %720 = vxpose.xlu0.b32.cont [4/16] 0.0, 128
        %721 = vxpose.xlu0.b32.cont [5/16] 0.0, 128
        %722 = vxpose.xlu0.b32.cont [6/16] 0.0, 128
        %723 = vxpose.xlu0.b32.cont [7/16] 0.0, 128
        %724 = vxpose.xlu0.b32.cont [8/16] 0.0, 128
        %725 = vxpose.xlu0.b32.cont [9/16] 0.0, 128
        %726 = vxpose.xlu0.b32.cont [10/16] 0.0, 128
        %727 = vxpose.xlu0.b32.cont [11/16] 0.0, 128
        %728 = vxpose.xlu0.b32.cont [12/16] 0.0, 128
        %729 = vxpose.xlu0.b32.cont [13/16] 0.0, 128
        %730 = vxpose.xlu0.b32.cont [14/16] 0.0, 128
        %731 = vxpose.xlu0.b32.cont [15/16] 0.0, 128
        %732 = vxpose.xlu0.b32.end [16/16] 0.0, 128
        %v733 = vpop.trf.xlu0
        %v734 = vpop.trf.xlu0
        %v735 = vpop.trf.xlu0
        %v736 = vpop.trf.xlu0
        %v737 = vpop.trf.xlu0
        %v738 = vpop.trf.xlu0
        %v739 = vpop.trf.xlu0
        %v740 = vpop.trf.xlu0
        %v741 = vpop.trf.xlu0
        %v742 = vpop.trf.xlu0
        %v743 = vpop.trf.xlu0
        %v744 = vpop.trf.xlu0
        %v745 = vpop.trf.xlu0
        %v746 = vpop.trf.xlu0
        %v747 = vpop.trf.xlu0
        %v748 = vpop.trf.xlu0
        %749 = vxpose.xlu0.b32.start [1/16] %v587, 128
        %750 = vxpose.xlu0.b32.cont [2/16] 0.0, 128
        %751 = vxpose.xlu0.b32.cont [3/16] 0.0, 128
        %752 = vxpose.xlu0.b32.cont [4/16] 0.0, 128
        %753 = vxpose.xlu0.b32.cont [5/16] 0.0, 128
        %754 = vxpose.xlu0.b32.cont [6/16] 0.0, 128
        %755 = vxpose.xlu0.b32.cont [7/16] 0.0, 128
        %756 = vxpose.xlu0.b32.cont [8/16] 0.0, 128
        %757 = vxpose.xlu0.b32.cont [9/16] 0.0, 128
        %758 = vxpose.xlu0.b32.cont [10/16] 0.0, 128
        %759 = vxpose.xlu0.b32.cont [11/16] 0.0, 128
        %760 = vxpose.xlu0.b32.cont [12/16] 0.0, 128
        %761 = vxpose.xlu0.b32.cont [13/16] 0.0, 128
        %762 = vxpose.xlu0.b32.cont [14/16] 0.0, 128
        %763 = vxpose.xlu0.b32.cont [15/16] 0.0, 128
        %764 = vxpose.xlu0.b32.end [16/16] 0.0, 128
        %v765 = vpop.trf.xlu0
        %v766 = vpop.trf.xlu0
        %v767 = vpop.trf.xlu0
        %v768 = vpop.trf.xlu0
        %v769 = vpop.trf.xlu0
        %v770 = vpop.trf.xlu0
        %v771 = vpop.trf.xlu0
        %v772 = vpop.trf.xlu0
        %v773 = vpop.trf.xlu0
        %v774 = vpop.trf.xlu0
        %v775 = vpop.trf.xlu0
        %v776 = vpop.trf.xlu0
        %v777 = vpop.trf.xlu0
        %v778 = vpop.trf.xlu0
        %v779 = vpop.trf.xlu0
        %v780 = vpop.trf.xlu0
        %781 = vxpose.xlu0.b32.start [1/16] %v584, 128
        %782 = vxpose.xlu0.b32.cont [2/16] 0.0, 128
        %783 = vxpose.xlu0.b32.cont [3/16] 0.0, 128
        %784 = vxpose.xlu0.b32.cont [4/16] 0.0, 128
        %785 = vxpose.xlu0.b32.cont [5/16] 0.0, 128
        %786 = vxpose.xlu0.b32.cont [6/16] 0.0, 128
        %787 = vxpose.xlu0.b32.cont [7/16] 0.0, 128
        %788 = vxpose.xlu0.b32.cont [8/16] 0.0, 128
        %789 = vxpose.xlu0.b32.cont [9/16] 0.0, 128
        %790 = vxpose.xlu0.b32.cont [10/16] 0.0, 128
        %791 = vxpose.xlu0.b32.cont [11/16] 0.0, 128
        %792 = vxpose.xlu0.b32.cont [12/16] 0.0, 128
        %793 = vxpose.xlu0.b32.cont [13/16] 0.0, 128
        %794 = vxpose.xlu0.b32.cont [14/16] 0.0, 128
        %795 = vxpose.xlu0.b32.cont [15/16] 0.0, 128
        %796 = vxpose.xlu0.b32.end [16/16] 0.0, 128
        %v797 = vpop.trf.xlu0
        %v798 = vpop.trf.xlu0
        %v799 = vpop.trf.xlu0
        %v800 = vpop.trf.xlu0
        %v801 = vpop.trf.xlu0
        %v802 = vpop.trf.xlu0
        %v803 = vpop.trf.xlu0
        %v804 = vpop.trf.xlu0
        %v805 = vpop.trf.xlu0
        %v806 = vpop.trf.xlu0
        %v807 = vpop.trf.xlu0
        %v808 = vpop.trf.xlu0
        %v809 = vpop.trf.xlu0
        %v810 = vpop.trf.xlu0
        %v811 = vpop.trf.xlu0
        %v812 = vpop.trf.xlu0
        %813 = vxpose.xlu0.b32.start [1/16] %v588, 128
        %814 = vxpose.xlu0.b32.cont [2/16] 0.0, 128
        %815 = vxpose.xlu0.b32.cont [3/16] 0.0, 128
        %816 = vxpose.xlu0.b32.cont [4/16] 0.0, 128
        %817 = vxpose.xlu0.b32.cont [5/16] 0.0, 128
        %818 = vxpose.xlu0.b32.cont [6/16] 0.0, 128
        %819 = vxpose.xlu0.b32.cont [7/16] 0.0, 128
        %820 = vxpose.xlu0.b32.cont [8/16] 0.0, 128
        %821 = vxpose.xlu0.b32.cont [9/16] 0.0, 128
        %822 = vxpose.xlu0.b32.cont [10/16] 0.0, 128
        %823 = vxpose.xlu0.b32.cont [11/16] 0.0, 128
        %824 = vxpose.xlu0.b32.cont [12/16] 0.0, 128
        %825 = vxpose.xlu0.b32.cont [13/16] 0.0, 128
        %826 = vxpose.xlu0.b32.cont [14/16] 0.0, 128
        %827 = vxpose.xlu0.b32.cont [15/16] 0.0, 128
        %828 = vxpose.xlu0.b32.end [16/16] 0.0, 128
        %v829 = vpop.trf.xlu0
        %v830 = vpop.trf.xlu0
        %v831 = vpop.trf.xlu0
        %v832 = vpop.trf.xlu0
        %v833 = vpop.trf.xlu0
        %v834 = vpop.trf.xlu0
        %v835 = vpop.trf.xlu0
        %v836 = vpop.trf.xlu0
        %v837 = vpop.trf.xlu0
        %v838 = vpop.trf.xlu0
        %v839 = vpop.trf.xlu0
        %v840 = vpop.trf.xlu0
        %v841 = vpop.trf.xlu0
        %v842 = vpop.trf.xlu0
        %v843 = vpop.trf.xlu0
        %v844 = vpop.trf.xlu0
        %v845 = vcombine.low %v605, %v669
        %v846 = vcombine.high %v605, %v669
        %v848 = vunpack.c.l.s4 1983009808
        %v849 = vunpack.c.0.s8 %v848
        %v850 = vlaneseq
        %v851 = vshrl.u32 %v850, 7
        %v852 = vsub.s32 %v849, %v851
        %v853 = vrot.slane %v845, %v852
        %v855 = vunpack.c.l.s4 1983009808
        %v856 = vunpack.c.0.s8 %v855
        %v857 = vlaneseq
        %v858 = vshrl.u32 %v857, 7
        %v859 = vsub.s32 %v856, %v858
        %v860 = vrot.slane %v846, %v859
        %v861 = vcombine.low %v637, %v701
        %v862 = vcombine.high %v637, %v701
        %v864 = vunpack.c.l.s4 1983009808
        %v865 = vunpack.c.0.s8 %v864
        %v866 = vlaneseq
        %v867 = vshrl.u32 %v866, 7
        %v868 = vsub.s32 %v865, %v867
        %v869 = vrot.slane %v861, %v868
        %v871 = vunpack.c.l.s4 1983009808
        %v872 = vunpack.c.0.s8 %v871
        %v873 = vlaneseq
        %v874 = vshrl.u32 %v873, 7
        %v875 = vsub.s32 %v872, %v874
        %v876 = vrot.slane %v862, %v875
        %v877 = vcombine.low %v733, %v797
        %v878 = vcombine.high %v733, %v797
        %v880 = vunpack.c.l.s4 1983009808
        %v881 = vunpack.c.0.s8 %v880
        %v882 = vlaneseq
        %v883 = vshrl.u32 %v882, 7
        %v884 = vsub.s32 %v881, %v883
        %v885 = vrot.slane %v877, %v884
        %v887 = vunpack.c.l.s4 1983009808
        %v888 = vunpack.c.0.s8 %v887
        %v889 = vlaneseq
        %v890 = vshrl.u32 %v889, 7
        %v891 = vsub.s32 %v888, %v890
        %v892 = vrot.slane %v878, %v891
        %v893 = vcombine.low %v765, %v829
        %v894 = vcombine.high %v765, %v829
        %v896 = vunpack.c.l.s4 1983009808
        %v897 = vunpack.c.0.s8 %v896
        %v898 = vlaneseq
        %v899 = vshrl.u32 %v898, 7
        %v900 = vsub.s32 %v897, %v899
        %v901 = vrot.slane %v893, %v900
        %v903 = vunpack.c.l.s4 1983009808
        %v904 = vunpack.c.0.s8 %v903
        %v905 = vlaneseq
        %v906 = vshrl.u32 %v905, 7
        %v907 = vsub.s32 %v904, %v906
        %v908 = vrot.slane %v894, %v907
        %v909 = vcombine.low %v853, %v869
        %v910 = vcombine.high %v853, %v869
        %v912 = vunpack.c.l.s4 1934713408
        %v913 = vunpack.c.0.s8 %v912
        %v914 = vlaneseq
        %v915 = vshrl.u32 %v914, 7
        %v916 = vsub.s32 %v913, %v915
        %v917 = vrot.slane %v909, %v916
        %v919 = vunpack.c.l.s4 1934713408
        %v920 = vunpack.c.0.s8 %v919
        %v921 = vlaneseq
        %v922 = vshrl.u32 %v921, 7
        %v923 = vsub.s32 %v920, %v922
        %v924 = vrot.slane %v910, %v923
        %v925 = vcombine.low %v860, %v876
        %v926 = vcombine.high %v860, %v876
        %v928 = vunpack.c.l.s4 1934713408
        %v929 = vunpack.c.0.s8 %v928
        %v930 = vlaneseq
        %v931 = vshrl.u32 %v930, 7
        %v932 = vsub.s32 %v929, %v931
        %v933 = vrot.slane %v925, %v932
        %v935 = vunpack.c.l.s4 1934713408
        %v936 = vunpack.c.0.s8 %v935
        %v937 = vlaneseq
        %v938 = vshrl.u32 %v937, 7
        %v939 = vsub.s32 %v936, %v938
        %v940 = vrot.slane %v926, %v939
        %v941 = vcombine.low %v885, %v901
        %v942 = vcombine.high %v885, %v901
        %v944 = vunpack.c.l.s4 1934713408
        %v945 = vunpack.c.0.s8 %v944
        %v946 = vlaneseq
        %v947 = vshrl.u32 %v946, 7
        %v948 = vsub.s32 %v945, %v947
        %v949 = vrot.slane %v941, %v948
        %v951 = vunpack.c.l.s4 1934713408
        %v952 = vunpack.c.0.s8 %v951
        %v953 = vlaneseq
        %v954 = vshrl.u32 %v953, 7
        %v955 = vsub.s32 %v952, %v954
        %v956 = vrot.slane %v942, %v955
        %v957 = vcombine.low %v892, %v908
        %v958 = vcombine.high %v892, %v908
        %v960 = vunpack.c.l.s4 1934713408
        %v961 = vunpack.c.0.s8 %v960
        %v962 = vlaneseq
        %v963 = vshrl.u32 %v962, 7
        %v964 = vsub.s32 %v961, %v963
        %v965 = vrot.slane %v957, %v964
        %v967 = vunpack.c.l.s4 1934713408
        %v968 = vunpack.c.0.s8 %v967
        %v969 = vlaneseq
        %v970 = vshrl.u32 %v969, 7
        %v971 = vsub.s32 %v968, %v970
        %v972 = vrot.slane %v958, %v971
        %v973 = vcombine.low %v917, %v949
        %v974 = vcombine.high %v917, %v949
        %v975 = vcombine.low %v924, %v956
        %v976 = vcombine.high %v924, %v956
        %v977 = vcombine.low %v933, %v965
        %v978 = vcombine.high %v933, %v965
        %v979 = vcombine.low %v940, %v972
        %v980 = vcombine.high %v940, %v972
        %981 = vxpose.xlu0.b32.start [1/16] %v973, 128
        %982 = vxpose.xlu0.b32.cont [2/16] 0.0, 128
        %983 = vxpose.xlu0.b32.cont [3/16] 0.0, 128
        %984 = vxpose.xlu0.b32.cont [4/16] 0.0, 128
        %985 = vxpose.xlu0.b32.cont [5/16] 0.0, 128
        %986 = vxpose.xlu0.b32.cont [6/16] 0.0, 128
        %987 = vxpose.xlu0.b32.cont [7/16] 0.0, 128
        %988 = vxpose.xlu0.b32.cont [8/16] 0.0, 128
        %989 = vxpose.xlu0.b32.cont [9/16] 0.0, 128
        %990 = vxpose.xlu0.b32.cont [10/16] 0.0, 128
        %991 = vxpose.xlu0.b32.cont [11/16] 0.0, 128
        %992 = vxpose.xlu0.b32.cont [12/16] 0.0, 128
        %993 = vxpose.xlu0.b32.cont [13/16] 0.0, 128
        %994 = vxpose.xlu0.b32.cont [14/16] 0.0, 128
        %995 = vxpose.xlu0.b32.cont [15/16] 0.0, 128
        %996 = vxpose.xlu0.b32.end [16/16] 0.0, 128
        %v997 = vpop.trf.xlu0
        %v998 = vpop.trf.xlu0
        %v999 = vpop.trf.xlu0
        %v1000 = vpop.trf.xlu0
        %v1001 = vpop.trf.xlu0
        %v1002 = vpop.trf.xlu0
        %v1003 = vpop.trf.xlu0
        %v1004 = vpop.trf.xlu0
        %v1005 = vpop.trf.xlu0
        %v1006 = vpop.trf.xlu0
        %v1007 = vpop.trf.xlu0
        %v1008 = vpop.trf.xlu0
        %v1009 = vpop.trf.xlu0
        %v1010 = vpop.trf.xlu0
        %v1011 = vpop.trf.xlu0
        %v1012 = vpop.trf.xlu0
        %1013 = vxpose.xlu0.b32.start [1/16] %v974, 128
        %1014 = vxpose.xlu0.b32.cont [2/16] 0.0, 128
        %1015 = vxpose.xlu0.b32.cont [3/16] 0.0, 128
        %1016 = vxpose.xlu0.b32.cont [4/16] 0.0, 128
        %1017 = vxpose.xlu0.b32.cont [5/16] 0.0, 128
        %1018 = vxpose.xlu0.b32.cont [6/16] 0.0, 128
        %1019 = vxpose.xlu0.b32.cont [7/16] 0.0, 128
        %1020 = vxpose.xlu0.b32.cont [8/16] 0.0, 128
        %1021 = vxpose.xlu0.b32.cont [9/16] 0.0, 128
        %1022 = vxpose.xlu0.b32.cont [10/16] 0.0, 128
        %1023 = vxpose.xlu0.b32.cont [11/16] 0.0, 128
        %1024 = vxpose.xlu0.b32.cont [12/16] 0.0, 128
        %1025 = vxpose.xlu0.b32.cont [13/16] 0.0, 128
        %1026 = vxpose.xlu0.b32.cont [14/16] 0.0, 128
        %1027 = vxpose.xlu0.b32.cont [15/16] 0.0, 128
        %1028 = vxpose.xlu0.b32.end [16/16] 0.0, 128
        %v1029 = vpop.trf.xlu0
        %v1030 = vpop.trf.xlu0
        %v1031 = vpop.trf.xlu0
        %v1032 = vpop.trf.xlu0
        %v1033 = vpop.trf.xlu0
        %v1034 = vpop.trf.xlu0
        %v1035 = vpop.trf.xlu0
        %v1036 = vpop.trf.xlu0
        %v1037 = vpop.trf.xlu0
        %v1038 = vpop.trf.xlu0
        %v1039 = vpop.trf.xlu0
        %v1040 = vpop.trf.xlu0
        %v1041 = vpop.trf.xlu0
        %v1042 = vpop.trf.xlu0
        %v1043 = vpop.trf.xlu0
        %v1044 = vpop.trf.xlu0
        %1045 = vxpose.xlu0.b32.start [1/16] %v975, 128
        %1046 = vxpose.xlu0.b32.cont [2/16] 0.0, 128
        %1047 = vxpose.xlu0.b32.cont [3/16] 0.0, 128
        %1048 = vxpose.xlu0.b32.cont [4/16] 0.0, 128
        %1049 = vxpose.xlu0.b32.cont [5/16] 0.0, 128
        %1050 = vxpose.xlu0.b32.cont [6/16] 0.0, 128
        %1051 = vxpose.xlu0.b32.cont [7/16] 0.0, 128
        %1052 = vxpose.xlu0.b32.cont [8/16] 0.0, 128
        %1053 = vxpose.xlu0.b32.cont [9/16] 0.0, 128
        %1054 = vxpose.xlu0.b32.cont [10/16] 0.0, 128
        %1055 = vxpose.xlu0.b32.cont [11/16] 0.0, 128
        %1056 = vxpose.xlu0.b32.cont [12/16] 0.0, 128
        %1057 = vxpose.xlu0.b32.cont [13/16] 0.0, 128
        %1058 = vxpose.xlu0.b32.cont [14/16] 0.0, 128
        %1059 = vxpose.xlu0.b32.cont [15/16] 0.0, 128
        %1060 = vxpose.xlu0.b32.end [16/16] 0.0, 128
        %v1061 = vpop.trf.xlu0
        %v1062 = vpop.trf.xlu0
        %v1063 = vpop.trf.xlu0
        %v1064 = vpop.trf.xlu0
        %v1065 = vpop.trf.xlu0
        %v1066 = vpop.trf.xlu0
        %v1067 = vpop.trf.xlu0
        %v1068 = vpop.trf.xlu0
        %v1069 = vpop.trf.xlu0
        %v1070 = vpop.trf.xlu0
        %v1071 = vpop.trf.xlu0
        %v1072 = vpop.trf.xlu0
        %v1073 = vpop.trf.xlu0
        %v1074 = vpop.trf.xlu0
        %v1075 = vpop.trf.xlu0
        %v1076 = vpop.trf.xlu0
        %1077 = vxpose.xlu0.b32.start [1/16] %v976, 128
        %1078 = vxpose.xlu0.b32.cont [2/16] 0.0, 128
        %1079 = vxpose.xlu0.b32.cont [3/16] 0.0, 128
        %1080 = vxpose.xlu0.b32.cont [4/16] 0.0, 128
        %1081 = vxpose.xlu0.b32.cont [5/16] 0.0, 128
        %1082 = vxpose.xlu0.b32.cont [6/16] 0.0, 128
        %1083 = vxpose.xlu0.b32.cont [7/16] 0.0, 128
        %1084 = vxpose.xlu0.b32.cont [8/16] 0.0, 128
        %1085 = vxpose.xlu0.b32.cont [9/16] 0.0, 128
        %1086 = vxpose.xlu0.b32.cont [10/16] 0.0, 128
        %1087 = vxpose.xlu0.b32.cont [11/16] 0.0, 128
        %1088 = vxpose.xlu0.b32.cont [12/16] 0.0, 128
        %1089 = vxpose.xlu0.b32.cont [13/16] 0.0, 128
        %1090 = vxpose.xlu0.b32.cont [14/16] 0.0, 128
        %1091 = vxpose.xlu0.b32.cont [15/16] 0.0, 128
        %1092 = vxpose.xlu0.b32.end [16/16] 0.0, 128
        %v1093 = vpop.trf.xlu0
        %v1094 = vpop.trf.xlu0
        %v1095 = vpop.trf.xlu0
        %v1096 = vpop.trf.xlu0
        %v1097 = vpop.trf.xlu0
        %v1098 = vpop.trf.xlu0
        %v1099 = vpop.trf.xlu0
        %v1100 = vpop.trf.xlu0
        %v1101 = vpop.trf.xlu0
        %v1102 = vpop.trf.xlu0
        %v1103 = vpop.trf.xlu0
        %v1104 = vpop.trf.xlu0
        %v1105 = vpop.trf.xlu0
        %v1106 = vpop.trf.xlu0
        %v1107 = vpop.trf.xlu0
        %v1108 = vpop.trf.xlu0
        %1109 = vxpose.xlu0.b32.start [1/16] %v977, 128
        %1110 = vxpose.xlu0.b32.cont [2/16] 0.0, 128
        %1111 = vxpose.xlu0.b32.cont [3/16] 0.0, 128
        %1112 = vxpose.xlu0.b32.cont [4/16] 0.0, 128
        %1113 = vxpose.xlu0.b32.cont [5/16] 0.0, 128
        %1114 = vxpose.xlu0.b32.cont [6/16] 0.0, 128
        %1115 = vxpose.xlu0.b32.cont [7/16] 0.0, 128
        %1116 = vxpose.xlu0.b32.cont [8/16] 0.0, 128
        %1117 = vxpose.xlu0.b32.cont [9/16] 0.0, 128
        %1118 = vxpose.xlu0.b32.cont [10/16] 0.0, 128
        %1119 = vxpose.xlu0.b32.cont [11/16] 0.0, 128
        %1120 = vxpose.xlu0.b32.cont [12/16] 0.0, 128
        %1121 = vxpose.xlu0.b32.cont [13/16] 0.0, 128
        %1122 = vxpose.xlu0.b32.cont [14/16] 0.0, 128
        %1123 = vxpose.xlu0.b32.cont [15/16] 0.0, 128
        %1124 = vxpose.xlu0.b32.end [16/16] 0.0, 128
        %v1125 = vpop.trf.xlu0
        %v1126 = vpop.trf.xlu0
        %v1127 = vpop.trf.xlu0
        %v1128 = vpop.trf.xlu0
        %v1129 = vpop.trf.xlu0
        %v1130 = vpop.trf.xlu0
        %v1131 = vpop.trf.xlu0
        %v1132 = vpop.trf.xlu0
        %v1133 = vpop.trf.xlu0
        %v1134 = vpop.trf.xlu0
        %v1135 = vpop.trf.xlu0
        %v1136 = vpop.trf.xlu0
        %v1137 = vpop.trf.xlu0
        %v1138 = vpop.trf.xlu0
        %v1139 = vpop.trf.xlu0
        %v1140 = vpop.trf.xlu0
        %1141 = vxpose.xlu0.b32.start [1/16] %v978, 128
        %1142 = vxpose.xlu0.b32.cont [2/16] 0.0, 128
        %1143 = vxpose.xlu0.b32.cont [3/16] 0.0, 128
        %1144 = vxpose.xlu0.b32.cont [4/16] 0.0, 128
        %1145 = vxpose.xlu0.b32.cont [5/16] 0.0, 128
        %1146 = vxpose.xlu0.b32.cont [6/16] 0.0, 128
        %1147 = vxpose.xlu0.b32.cont [7/16] 0.0, 128
        %1148 = vxpose.xlu0.b32.cont [8/16] 0.0, 128
        %1149 = vxpose.xlu0.b32.cont [9/16] 0.0, 128
        %1150 = vxpose.xlu0.b32.cont [10/16] 0.0, 128
        %1151 = vxpose.xlu0.b32.cont [11/16] 0.0, 128
        %1152 = vxpose.xlu0.b32.cont [12/16] 0.0, 128
        %1153 = vxpose.xlu0.b32.cont [13/16] 0.0, 128
        %1154 = vxpose.xlu0.b32.cont [14/16] 0.0, 128
        %1155 = vxpose.xlu0.b32.cont [15/16] 0.0, 128
        %1156 = vxpose.xlu0.b32.end [16/16] 0.0, 128
        %v1157 = vpop.trf.xlu0
        %v1158 = vpop.trf.xlu0
        %v1159 = vpop.trf.xlu0
        %v1160 = vpop.trf.xlu0
        %v1161 = vpop.trf.xlu0
        %v1162 = vpop.trf.xlu0
        %v1163 = vpop.trf.xlu0
        %v1164 = vpop.trf.xlu0
        %v1165 = vpop.trf.xlu0
        %v1166 = vpop.trf.xlu0
        %v1167 = vpop.trf.xlu0
        %v1168 = vpop.trf.xlu0
        %v1169 = vpop.trf.xlu0
        %v1170 = vpop.trf.xlu0
        %v1171 = vpop.trf.xlu0
        %v1172 = vpop.trf.xlu0
        %1173 = vxpose.xlu0.b32.start [1/16] %v979, 128
        %1174 = vxpose.xlu0.b32.cont [2/16] 0.0, 128
        %1175 = vxpose.xlu0.b32.cont [3/16] 0.0, 128
        %1176 = vxpose.xlu0.b32.cont [4/16] 0.0, 128
        %1177 = vxpose.xlu0.b32.cont [5/16] 0.0, 128
        %1178 = vxpose.xlu0.b32.cont [6/16] 0.0, 128
        %1179 = vxpose.xlu0.b32.cont [7/16] 0.0, 128
        %1180 = vxpose.xlu0.b32.cont [8/16] 0.0, 128
        %1181 = vxpose.xlu0.b32.cont [9/16] 0.0, 128
        %1182 = vxpose.xlu0.b32.cont [10/16] 0.0, 128
        %1183 = vxpose.xlu0.b32.cont [11/16] 0.0, 128
        %1184 = vxpose.xlu0.b32.cont [12/16] 0.0, 128
        %1185 = vxpose.xlu0.b32.cont [13/16] 0.0, 128
        %1186 = vxpose.xlu0.b32.cont [14/16] 0.0, 128
        %1187 = vxpose.xlu0.b32.cont [15/16] 0.0, 128
        %1188 = vxpose.xlu0.b32.end [16/16] 0.0, 128
        %v1189 = vpop.trf.xlu0
        %v1190 = vpop.trf.xlu0
        %v1191 = vpop.trf.xlu0
        %v1192 = vpop.trf.xlu0
        %v1193 = vpop.trf.xlu0
        %v1194 = vpop.trf.xlu0
        %v1195 = vpop.trf.xlu0
        %v1196 = vpop.trf.xlu0
        %v1197 = vpop.trf.xlu0
        %v1198 = vpop.trf.xlu0
        %v1199 = vpop.trf.xlu0
        %v1200 = vpop.trf.xlu0
        %v1201 = vpop.trf.xlu0
        %v1202 = vpop.trf.xlu0
        %v1203 = vpop.trf.xlu0
        %v1204 = vpop.trf.xlu0
        %1205 = vxpose.xlu0.b32.start [1/16] %v980, 128
        %1206 = vxpose.xlu0.b32.cont [2/16] 0.0, 128
        %1207 = vxpose.xlu0.b32.cont [3/16] 0.0, 128
        %1208 = vxpose.xlu0.b32.cont [4/16] 0.0, 128
        %1209 = vxpose.xlu0.b32.cont [5/16] 0.0, 128
        %1210 = vxpose.xlu0.b32.cont [6/16] 0.0, 128
        %1211 = vxpose.xlu0.b32.cont [7/16] 0.0, 128
        %1212 = vxpose.xlu0.b32.cont [8/16] 0.0, 128
        %1213 = vxpose.xlu0.b32.cont [9/16] 0.0, 128
        %1214 = vxpose.xlu0.b32.cont [10/16] 0.0, 128
        %1215 = vxpose.xlu0.b32.cont [11/16] 0.0, 128
        %1216 = vxpose.xlu0.b32.cont [12/16] 0.0, 128
        %1217 = vxpose.xlu0.b32.cont [13/16] 0.0, 128
        %1218 = vxpose.xlu0.b32.cont [14/16] 0.0, 128
        %1219 = vxpose.xlu0.b32.cont [15/16] 0.0, 128
        %1220 = vxpose.xlu0.b32.end [16/16] 0.0, 128
        %v1221 = vpop.trf.xlu0
        %v1222 = vpop.trf.xlu0
        %v1223 = vpop.trf.xlu0
        %v1224 = vpop.trf.xlu0
        %v1225 = vpop.trf.xlu0
        %v1226 = vpop.trf.xlu0
        %v1227 = vpop.trf.xlu0
        %v1228 = vpop.trf.xlu0
        %v1229 = vpop.trf.xlu0
        %v1230 = vpop.trf.xlu0
        %v1231 = vpop.trf.xlu0
        %v1232 = vpop.trf.xlu0
        %v1233 = vpop.trf.xlu0
        %v1234 = vpop.trf.xlu0
        %v1235 = vpop.trf.xlu0
        %v1236 = vpop.trf.xlu0
        %v1237 = vcombine.low %v997, %v1061
        %v1239 = vunpack.c.l.s4 1983009808
        %v1240 = vunpack.c.0.s8 %v1239
        %v1241 = vlaneseq
        %v1242 = vshrl.u32 %v1241, 7
        %v1243 = vsub.s32 %v1240, %v1242
        %v1244 = vrot.slane %v1237, %v1243
        %v1245 = vcombine.low %v1029, %v1093
        %v1247 = vunpack.c.l.s4 1983009808
        %v1248 = vunpack.c.0.s8 %v1247
        %v1249 = vlaneseq
        %v1250 = vshrl.u32 %v1249, 7
        %v1251 = vsub.s32 %v1248, %v1250
        %v1252 = vrot.slane %v1245, %v1251
        %v1253 = vcombine.low %v1125, %v1189
        %v1255 = vunpack.c.l.s4 1983009808
        %v1256 = vunpack.c.0.s8 %v1255
        %v1257 = vlaneseq
        %v1258 = vshrl.u32 %v1257, 7
        %v1259 = vsub.s32 %v1256, %v1258
        %v1260 = vrot.slane %v1253, %v1259
        %v1261 = vcombine.low %v1157, %v1221
        %v1263 = vunpack.c.l.s4 1983009808
        %v1264 = vunpack.c.0.s8 %v1263
        %v1265 = vlaneseq
        %v1266 = vshrl.u32 %v1265, 7
        %v1267 = vsub.s32 %v1264, %v1266
        %v1268 = vrot.slane %v1261, %v1267
        %v1269 = vcombine.low %v1244, %v1252
        %v1270 = vcombine.high %v1244, %v1252
        %v1272 = vunpack.c.l.s4 1934713408
        %v1273 = vunpack.c.0.s8 %v1272
        %v1274 = vlaneseq
        %v1275 = vshrl.u32 %v1274, 7
        %v1276 = vsub.s32 %v1273, %v1275
        %v1277 = vrot.slane %v1269, %v1276
        %v1279 = vunpack.c.l.s4 1934713408
        %v1280 = vunpack.c.0.s8 %v1279
        %v1281 = vlaneseq
        %v1282 = vshrl.u32 %v1281, 7
        %v1283 = vsub.s32 %v1280, %v1282
        %v1284 = vrot.slane %v1270, %v1283
        %v1285 = vcombine.low %v1260, %v1268
        %v1286 = vcombine.high %v1260, %v1268
        %v1288 = vunpack.c.l.s4 1934713408
        %v1289 = vunpack.c.0.s8 %v1288
        %v1290 = vlaneseq
        %v1291 = vshrl.u32 %v1290, 7
        %v1292 = vsub.s32 %v1289, %v1291
        %v1293 = vrot.slane %v1285, %v1292
        %v1295 = vunpack.c.l.s4 1934713408
        %v1296 = vunpack.c.0.s8 %v1295
        %v1297 = vlaneseq
        %v1298 = vshrl.u32 %v1297, 7
        %v1299 = vsub.s32 %v1296, %v1298
        %v1300 = vrot.slane %v1286, %v1299
        %v1301 = vcombine.low %v1277, %v1293
        %v1302 = vcombine.high %v1277, %v1293
        %v1303 = vcombine.low %v1284, %v1300
        %v1304 = vcombine.high %v1284, %v1300
        %1306 = vrot.lane.b32.xlu0 %v351, 120
        %v1307 = vpop.permute.xlu0 %1306
        %1308 = vrot.lane.b32.xlu0 %v351, 112
        %v1309 = vpop.permute.xlu0 %1308
        %1310 = vrot.lane.b32.xlu0 %v351, 104
        %v1311 = vpop.permute.xlu0 %1310
        %1312 = vrot.lane.b32.xlu0 %v351, 64
        %v1313 = vpop.permute.xlu0 %1312
        %1314 = vrot.lane.b32.xlu0 %v1307, 64
        %v1315 = vpop.permute.xlu0 %1314
        %1316 = vrot.lane.b32.xlu0 %v1309, 64
        %v1317 = vpop.permute.xlu0 %1316
        %1318 = vrot.lane.b32.xlu0 %v1311, 64
        %v1319 = vpop.permute.xlu0 %1318
        %v1324 = vcombine.low %v1313, %v1317
        %v1325 = vcombine.high %v1313, %v1317
        %v1327 = vunpack.c.l.s4 1983009808
        %v1328 = vunpack.c.0.s8 %v1327
        %v1329 = vlaneseq
        %v1330 = vshrl.u32 %v1329, 7
        %v1331 = vsub.s32 %v1328, %v1330
        %v1332 = vrot.slane %v1324, %v1331
        %v1334 = vunpack.c.l.s4 1983009808
        %v1335 = vunpack.c.0.s8 %v1334
        %v1336 = vlaneseq
        %v1337 = vshrl.u32 %v1336, 7
        %v1338 = vsub.s32 %v1335, %v1337
        %v1339 = vrot.slane %v1325, %v1338
        %v1340 = vcombine.low %v1315, %v1319
        %v1341 = vcombine.high %v1315, %v1319
        %v1343 = vunpack.c.l.s4 1983009808
        %v1344 = vunpack.c.0.s8 %v1343
        %v1345 = vlaneseq
        %v1346 = vshrl.u32 %v1345, 7
        %v1347 = vsub.s32 %v1344, %v1346
        %v1348 = vrot.slane %v1340, %v1347
        %v1350 = vunpack.c.l.s4 1983009808
        %v1351 = vunpack.c.0.s8 %v1350
        %v1352 = vlaneseq
        %v1353 = vshrl.u32 %v1352, 7
        %v1354 = vsub.s32 %v1351, %v1353
        %v1355 = vrot.slane %v1341, %v1354
        %v1356 = vcombine.low %v1332, %v1348
        %v1357 = vcombine.high %v1332, %v1348
        %v1359 = vunpack.c.l.s4 1934713408
        %v1360 = vunpack.c.0.s8 %v1359
        %v1361 = vlaneseq
        %v1362 = vshrl.u32 %v1361, 7
        %v1363 = vsub.s32 %v1360, %v1362
        %v1364 = vrot.slane %v1356, %v1363
        %v1366 = vunpack.c.l.s4 1934713408
        %v1367 = vunpack.c.0.s8 %v1366
        %v1368 = vlaneseq
        %v1369 = vshrl.u32 %v1368, 7
        %v1370 = vsub.s32 %v1367, %v1369
        %v1371 = vrot.slane %v1357, %v1370
        %v1372 = vcombine.low %v1339, %v1355
        %v1373 = vcombine.high %v1339, %v1355
        %v1375 = vunpack.c.l.s4 1934713408
        %v1376 = vunpack.c.0.s8 %v1375
        %v1377 = vlaneseq
        %v1378 = vshrl.u32 %v1377, 7
        %v1379 = vsub.s32 %v1376, %v1378
        %v1380 = vrot.slane %v1372, %v1379
        %v1382 = vunpack.c.l.s4 1934713408
        %v1383 = vunpack.c.0.s8 %v1382
        %v1384 = vlaneseq
        %v1385 = vshrl.u32 %v1384, 7
        %v1386 = vsub.s32 %v1383, %v1385
        %v1387 = vrot.slane %v1373, %v1386
        %v1388 = vcombine.high %v1364, 0.0
        %v1389 = vcombine.high %v1371, 0.0
        %v1390 = vcombine.high %v1380, 0.0
        %v1391 = vcombine.high %v1387, 0.0
        %v1392 = vcombine.low %v1364, %v1371
        %v1394 = vunpack.c.l.s4 1983009808
        %v1395 = vunpack.c.0.s8 %v1394
        %v1396 = vlaneseq
        %v1397 = vshrl.u32 %v1396, 7
        %v1398 = vsub.s32 %v1395, %v1397
        %v1399 = vrot.slane %v1392, %v1398
        %v1400 = vcombine.low %v1388, %v1389
        %v1402 = vunpack.c.l.s4 1983009808
        %v1403 = vunpack.c.0.s8 %v1402
        %v1404 = vlaneseq
        %v1405 = vshrl.u32 %v1404, 7
        %v1406 = vsub.s32 %v1403, %v1405
        %v1407 = vrot.slane %v1400, %v1406
        %v1408 = vcombine.low %v1380, %v1387
        %v1410 = vunpack.c.l.s4 1983009808
        %v1411 = vunpack.c.0.s8 %v1410
        %v1412 = vlaneseq
        %v1413 = vshrl.u32 %v1412, 7
        %v1414 = vsub.s32 %v1411, %v1413
        %v1415 = vrot.slane %v1408, %v1414
        %v1416 = vcombine.low %v1390, %v1391
        %v1418 = vunpack.c.l.s4 1983009808
        %v1419 = vunpack.c.0.s8 %v1418
        %v1420 = vlaneseq
        %v1421 = vshrl.u32 %v1420, 7
        %v1422 = vsub.s32 %v1419, %v1421
        %v1423 = vrot.slane %v1416, %v1422
        %v1424 = vcombine.low %v1399, %v1407
        %v1425 = vcombine.high %v1399, %v1407
        %v1427 = vunpack.c.l.s4 1934713408
        %v1428 = vunpack.c.0.s8 %v1427
        %v1429 = vlaneseq
        %v1430 = vshrl.u32 %v1429, 7
        %v1431 = vsub.s32 %v1428, %v1430
        %v1432 = vrot.slane %v1424, %v1431
        %v1434 = vunpack.c.l.s4 1934713408
        %v1435 = vunpack.c.0.s8 %v1434
        %v1436 = vlaneseq
        %v1437 = vshrl.u32 %v1436, 7
        %v1438 = vsub.s32 %v1435, %v1437
        %v1439 = vrot.slane %v1425, %v1438
        %v1440 = vcombine.low %v1415, %v1423
        %v1441 = vcombine.high %v1415, %v1423
        %v1443 = vunpack.c.l.s4 1934713408
        %v1444 = vunpack.c.0.s8 %v1443
        %v1445 = vlaneseq
        %v1446 = vshrl.u32 %v1445, 7
        %v1447 = vsub.s32 %v1444, %v1446
        %v1448 = vrot.slane %v1440, %v1447
        %v1450 = vunpack.c.l.s4 1934713408
        %v1451 = vunpack.c.0.s8 %v1450
        %v1452 = vlaneseq
        %v1453 = vshrl.u32 %v1452, 7
        %v1454 = vsub.s32 %v1451, %v1453
        %v1455 = vrot.slane %v1441, %v1454
        %v1456 = vcombine.low %v1432, %v1448
        %v1457 = vcombine.high %v1432, %v1448
        %v1458 = vcombine.low %v1439, %v1455
        %v1459 = vcombine.high %v1439, %v1455
        %v1460 = vpack.c.bf16 %v505, %v505
        %v1461 = vpack.c.bf16 %v506, %v506
        %v1462 = vpack.c.bf16 %v507, %v507
        %v1463 = vpack.c.bf16 %v508, %v508
        %v1464 = vpack.c.bf16 %v1301, %v1301
        %v1465 = vpack.c.bf16 %v1302, %v1302
        %v1466 = vpack.c.bf16 %v1303, %v1303
        %v1467 = vpack.c.bf16 %v1304, %v1304
        %vm1468 = vcmask 64512
        %v1470 = vsel %vm1468, %v1460, 0
        %vm1472 = vcmask 1043456
        %v1474 = vsel %vm1472, %v1464, 0
        %1476 = vmatprep.subr.bf16.mxu0 0
        %1477 = vmatpush1.bf16.msra.mxu0 0
        %1478 = vmatprep.subr.bf16.mxu0 0
        %1479 = vmatpush1.bf16.msra.mxu0 0
        %1480 = vmatprep.subr.bf16.mxu0 0
        %1481 = vmatpush1.bf16.msra.mxu0 0
        %1482 = vmatprep.subr.bf16.mxu0 0
        %1483 = vmatpush1.bf16.msra.mxu0 0
        %1484 = vmatprep.subr.bf16.mxu0 0
        %1485 = vmatpush1.bf16.msra.mxu0 0
        %1486 = vmatprep.subr.bf16.mxu0 0
        %1487 = vmatpush1.bf16.msra.mxu0 0
        %1488 = vmatprep.subr.bf16.mxu0 0
        %1489 = vmatpush1.bf16.msra.mxu0 0
        %1490 = vmatprep.subr.bf16.mxu0 0
        %1491 = vmatpush1.bf16.msra.mxu0 %v1474
        %1492 = vmatprep.subr.bf16.mxu0 0
        %1493 = vmatpush2.bf16.msra.mxu0 0
        %1494 = vmatprep.subr.bf16.mxu0 0
        %1495 = vmatpush2.bf16.msra.mxu0 0
        %1496 = vmatprep.subr.bf16.mxu0 0
        %1497 = vmatpush2.bf16.msra.mxu0 0
        %1498 = vmatprep.subr.bf16.mxu0 0
        %1499 = vmatpush2.bf16.msra.mxu0 0
        %1500 = vmatprep.subr.bf16.mxu0 0
        %1501 = vmatpush2.bf16.msra.mxu0 0
        %1502 = vmatprep.subr.bf16.mxu0 0
        %1503 = vmatpush2.bf16.msra.mxu0 0
        %1504 = vmatprep.subr.bf16.mxu0 0
        %1505 = vmatpush2.bf16.msra.mxu0 0
        %1506 = vmatprep.subr.bf16.mxu0 0
        %1507 = vmatpush2.bf16.msra.mxu0 0
        %1508 = vmatprep.mubr.bf16.mxu0 0
        %1509 = vmatmul.mubr.bf16.gmra.mxu0 %v1470
        %v1510 = vpop.f32.mrf.mxu0
        %v1511 = vadd.f32 0.0, %v1510
        %v1512 = vpop.f32.mrf.mxu0
        %v1513 = vpop.f32.mrf.mxu0
        %v1514 = vpop.f32.mrf.mxu0
        %1515 = vdwg.mxu0
        %v1517 = vsel %vm1468, %v1461, 0
        %v1520 = vsel %vm1472, %v1465, 0
        %1522 = vmatprep.subr.bf16.mxu0 0
        %1523 = vmatpush1.bf16.msra.mxu0 0
        %1524 = vmatprep.subr.bf16.mxu0 0
        %1525 = vmatpush1.bf16.msra.mxu0 0
        %1526 = vmatprep.subr.bf16.mxu0 0
        %1527 = vmatpush1.bf16.msra.mxu0 0
        %1528 = vmatprep.subr.bf16.mxu0 0
        %1529 = vmatpush1.bf16.msra.mxu0 0
        %1530 = vmatprep.subr.bf16.mxu0 0
        %1531 = vmatpush1.bf16.msra.mxu0 0
        %1532 = vmatprep.subr.bf16.mxu0 0
        %1533 = vmatpush1.bf16.msra.mxu0 0
        %1534 = vmatprep.subr.bf16.mxu0 0
        %1535 = vmatpush1.bf16.msra.mxu0 0
        %1536 = vmatprep.subr.bf16.mxu0 0
        %1537 = vmatpush1.bf16.msra.mxu0 %v1520
        %1538 = vmatprep.subr.bf16.mxu0 0
        %1539 = vmatpush2.bf16.msra.mxu0 0
        %1540 = vmatprep.subr.bf16.mxu0 0
        %1541 = vmatpush2.bf16.msra.mxu0 0
        %1542 = vmatprep.subr.bf16.mxu0 0
        %1543 = vmatpush2.bf16.msra.mxu0 0
        %1544 = vmatprep.subr.bf16.mxu0 0
        %1545 = vmatpush2.bf16.msra.mxu0 0
        %1546 = vmatprep.subr.bf16.mxu0 0
        %1547 = vmatpush2.bf16.msra.mxu0 0
        %1548 = vmatprep.subr.bf16.mxu0 0
        %1549 = vmatpush2.bf16.msra.mxu0 0
        %1550 = vmatprep.subr.bf16.mxu0 0
        %1551 = vmatpush2.bf16.msra.mxu0 0
        %1552 = vmatprep.subr.bf16.mxu0 0
        %1553 = vmatpush2.bf16.msra.mxu0 0
        %1554 = vmatprep.mubr.bf16.mxu0 0
        %1555 = vmatmul.mubr.bf16.gmra.mxu0 %v1517
        %v1556 = vpop.f32.mrf.mxu0
        %v1557 = vadd.f32 0.0, %v1556
        %v1558 = vpop.f32.mrf.mxu0
        %v1559 = vpop.f32.mrf.mxu0
        %v1560 = vpop.f32.mrf.mxu0
        %1561 = vdwg.mxu0
        %v1563 = vsel %vm1468, %v1462, 0
        %v1566 = vsel %vm1472, %v1466, 0
        %1568 = vmatprep.subr.bf16.mxu0 0
        %1569 = vmatpush1.bf16.msra.mxu0 0
        %1570 = vmatprep.subr.bf16.mxu0 0
        %1571 = vmatpush1.bf16.msra.mxu0 0
        %1572 = vmatprep.subr.bf16.mxu0 0
        %1573 = vmatpush1.bf16.msra.mxu0 0
        %1574 = vmatprep.subr.bf16.mxu0 0
        %1575 = vmatpush1.bf16.msra.mxu0 0
        %1576 = vmatprep.subr.bf16.mxu0 0
        %1577 = vmatpush1.bf16.msra.mxu0 0
        %1578 = vmatprep.subr.bf16.mxu0 0
        %1579 = vmatpush1.bf16.msra.mxu0 0
        %1580 = vmatprep.subr.bf16.mxu0 0
        %1581 = vmatpush1.bf16.msra.mxu0 0
        %1582 = vmatprep.subr.bf16.mxu0 0
        %1583 = vmatpush1.bf16.msra.mxu0 %v1566
        %1584 = vmatprep.subr.bf16.mxu0 0
        %1585 = vmatpush2.bf16.msra.mxu0 0
        %1586 = vmatprep.subr.bf16.mxu0 0
        %1587 = vmatpush2.bf16.msra.mxu0 0
        %1588 = vmatprep.subr.bf16.mxu0 0
        %1589 = vmatpush2.bf16.msra.mxu0 0
        %1590 = vmatprep.subr.bf16.mxu0 0
        %1591 = vmatpush2.bf16.msra.mxu0 0
        %1592 = vmatprep.subr.bf16.mxu0 0
        %1593 = vmatpush2.bf16.msra.mxu0 0
        %1594 = vmatprep.subr.bf16.mxu0 0
        %1595 = vmatpush2.bf16.msra.mxu0 0
        %1596 = vmatprep.subr.bf16.mxu0 0
        %1597 = vmatpush2.bf16.msra.mxu0 0
        %1598 = vmatprep.subr.bf16.mxu0 0
        %1599 = vmatpush2.bf16.msra.mxu0 0
        %1600 = vmatprep.mubr.bf16.mxu0 0
        %1601 = vmatmul.mubr.bf16.gmra.mxu0 %v1563
        %v1602 = vpop.f32.mrf.mxu0
        %v1603 = vadd.f32 0.0, %v1602
        %v1604 = vpop.f32.mrf.mxu0
        %v1605 = vpop.f32.mrf.mxu0
        %v1606 = vpop.f32.mrf.mxu0
        %1607 = vdwg.mxu0
        %v1609 = vsel %vm1468, %v1463, 0
        %v1612 = vsel %vm1472, %v1467, 0
        %1614 = vmatprep.subr.bf16.mxu0 0
        %1615 = vmatpush1.bf16.msra.mxu0 0
        %1616 = vmatprep.subr.bf16.mxu0 0
        %1617 = vmatpush1.bf16.msra.mxu0 0
        %1618 = vmatprep.subr.bf16.mxu0 0
        %1619 = vmatpush1.bf16.msra.mxu0 0
        %1620 = vmatprep.subr.bf16.mxu0 0
        %1621 = vmatpush1.bf16.msra.mxu0 0
        %1622 = vmatprep.subr.bf16.mxu0 0
        %1623 = vmatpush1.bf16.msra.mxu0 0
        %1624 = vmatprep.subr.bf16.mxu0 0
        %1625 = vmatpush1.bf16.msra.mxu0 0
        %1626 = vmatprep.subr.bf16.mxu0 0
        %1627 = vmatpush1.bf16.msra.mxu0 0
        %1628 = vmatprep.subr.bf16.mxu0 0
        %1629 = vmatpush1.bf16.msra.mxu0 %v1612
        %1630 = vmatprep.subr.bf16.mxu0 0
        %1631 = vmatpush2.bf16.msra.mxu0 0
        %1632 = vmatprep.subr.bf16.mxu0 0
        %1633 = vmatpush2.bf16.msra.mxu0 0
        %1634 = vmatprep.subr.bf16.mxu0 0
        %1635 = vmatpush2.bf16.msra.mxu0 0
        %1636 = vmatprep.subr.bf16.mxu0 0
        %1637 = vmatpush2.bf16.msra.mxu0 0
        %1638 = vmatprep.subr.bf16.mxu0 0
        %1639 = vmatpush2.bf16.msra.mxu0 0
        %1640 = vmatprep.subr.bf16.mxu0 0
        %1641 = vmatpush2.bf16.msra.mxu0 0
        %1642 = vmatprep.subr.bf16.mxu0 0
        %1643 = vmatpush2.bf16.msra.mxu0 0
        %1644 = vmatprep.subr.bf16.mxu0 0
        %1645 = vmatpush2.bf16.msra.mxu0 0
        %1646 = vmatprep.mubr.bf16.mxu0 0
        %1647 = vmatmul.mubr.bf16.gmra.mxu0 %v1609
        %v1648 = vpop.f32.mrf.mxu0
        %v1649 = vadd.f32 0.0, %v1648
        %v1650 = vpop.f32.mrf.mxu0
        %v1651 = vpop.f32.mrf.mxu0
        %v1652 = vpop.f32.mrf.mxu0
        %1653 = vdwg.mxu0
        %v1654 = vlaneseq
        %v1655 = vshrl.u32 %v1654, 7
        %v1656 = vlaneseq
        %v1657 = vand.u32 %v1656, 127
        %vm1658 = vcmp.ge.s32.totalorder %v1655, %v1657
        %v1659 = vpack.c.bf16 %v1511, %v1511
        %v1660 = vpack.c.bf16 %v1557, %v1557
        %v1661 = vpack.c.bf16 %v1603, %v1603
        %v1662 = vpack.c.bf16 %v1649, %v1649
        %v1663 = vsel %vm1658, 1, 0
        %vm1664 = vcmp.eq.s32.totalorder %v1663, 1
        %vm1665 = vmpackc.low %vm1664, %vm1664
        %v1666 = vsel %vm1665, %v1659, 0
        %v1667 = vsel %vm1665, %v1660, 0
        %v1668 = vsel %vm1665, %v1661, 0
        %v1669 = vsel %vm1665, %v1662, 0
        %v1670 = vpack.c.bf16 %v1456, %v1456
        %v1671 = vpack.c.bf16 %v1457, %v1457
        %v1672 = vpack.c.bf16 %v1458, %v1458
        %v1673 = vpack.c.bf16 %v1459, %v1459
        %v1674 = vld [vmem:[#allocation2] sm:$0xff]
        %v1675 = vld [vmem:[#allocation2 + $0x8] sm:$0xff]
        %v1676 = vld [vmem:[#allocation2 + $0x10] sm:$0xff]
        %v1677 = vld [vmem:[#allocation2 + $0x18] sm:$0xff]
        %v1679 = vsel %vm1468, %v505, 0
        %1681 = vmatprep.subr.mxu0 0.0
        %1682 = vmatpush1.msra.mxu0 0.0
        %1683 = vmatprep.subr.mxu0 0.0
        %1684 = vmatpush1.msra.mxu0 0.0
        %1685 = vmatprep.subr.mxu0 0.0
        %1686 = vmatpush1.msra.mxu0 0.0
        %1687 = vmatprep.subr.mxu0 0.0
        %1688 = vmatpush1.msra.mxu0 0.0
        %1689 = vmatprep.subr.mxu0 0.0
        %1690 = vmatpush1.msra.mxu0 0.0
        %1691 = vmatprep.subr.mxu0 0.0
        %1692 = vmatpush1.msra.mxu0 0.0
        %1693 = vmatprep.subr.mxu0 0.0
        %1694 = vmatpush1.msra.mxu0 0.0
        %1695 = vmatprep.subr.mxu0 0.0
        %1696 = vmatpush1.msra.mxu0 0.0
        %1697 = vmatprep.subr.mxu0 0.0
        %1698 = vmatpush1.msra.mxu0 0.0
        %1699 = vmatprep.subr.mxu0 0.0
        %1700 = vmatpush1.msra.mxu0 0.0
        %1701 = vmatprep.subr.mxu0 0.0
        %1702 = vmatpush1.msra.mxu0 0.0
        %1703 = vmatprep.subr.mxu0 0.0
        %1704 = vmatpush1.msra.mxu0 0.0
        %1705 = vmatprep.subr.mxu0 0.0
        %1706 = vmatpush1.msra.mxu0 0.0
        %1707 = vmatprep.subr.mxu0 0.0
        %1708 = vmatpush1.msra.mxu0 0.0
        %1709 = vmatprep.subr.mxu0 0.0
        %1710 = vmatpush1.msra.mxu0 0.0
        %1711 = vmatprep.subr.mxu0 0.0
        %1712 = vmatpush1.msra.mxu0 %v1674
        %1713 = vmatprep.subr.mxu0 0.0
        %1714 = vmatpush2.msra.mxu0 0.0
        %1715 = vmatprep.subr.mxu0 0.0
        %1716 = vmatpush2.msra.mxu0 0.0
        %1717 = vmatprep.subr.mxu0 0.0
        %1718 = vmatpush2.msra.mxu0 0.0
        %1719 = vmatprep.subr.mxu0 0.0
        %1720 = vmatpush2.msra.mxu0 0.0
        %1721 = vmatprep.subr.mxu0 0.0
        %1722 = vmatpush2.msra.mxu0 0.0
        %1723 = vmatprep.subr.mxu0 0.0
        %1724 = vmatpush2.msra.mxu0 0.0
        %1725 = vmatprep.subr.mxu0 0.0
        %1726 = vmatpush2.msra.mxu0 0.0
        %1727 = vmatprep.subr.mxu0 0.0
        %1728 = vmatpush2.msra.mxu0 0.0
        %1729 = vmatprep.subr.mxu0 0.0
        %1730 = vmatpush2.msra.mxu0 0.0
        %1731 = vmatprep.subr.mxu0 0.0
        %1732 = vmatpush2.msra.mxu0 0.0
        %1733 = vmatprep.subr.mxu0 0.0
        %1734 = vmatpush2.msra.mxu0 0.0
        %1735 = vmatprep.subr.mxu0 0.0
        %1736 = vmatpush2.msra.mxu0 0.0
        %1737 = vmatprep.subr.mxu0 0.0
        %1738 = vmatpush2.msra.mxu0 0.0
        %1739 = vmatprep.subr.mxu0 0.0
        %1740 = vmatpush2.msra.mxu0 0.0
        %1741 = vmatprep.subr.mxu0 0.0
        %1742 = vmatpush2.msra.mxu0 0.0
        %1743 = vmatprep.subr.mxu0 0.0
        %1744 = vmatpush2.msra.mxu0 0.0
        %1745 = vmatprep.mubr.f32.mxu0 0.0
        %1746 = vmatmul.mubr.f32.gmra.mxu0 %v1679
        %v1747 = vpop.f32.mrf.mxu0
        %v1748 = vadd.f32 0.0, %v1747
        %v1749 = vpop.f32.mrf.mxu0
        %1750 = vdwg.mxu0
        %v1752 = vsel %vm1468, %v506, 0
        %1754 = vmatprep.subr.mxu0 0.0
        %1755 = vmatpush1.msra.mxu0 0.0
        %1756 = vmatprep.subr.mxu0 0.0
        %1757 = vmatpush1.msra.mxu0 0.0
        %1758 = vmatprep.subr.mxu0 0.0
        %1759 = vmatpush1.msra.mxu0 0.0
        %1760 = vmatprep.subr.mxu0 0.0
        %1761 = vmatpush1.msra.mxu0 0.0
        %1762 = vmatprep.subr.mxu0 0.0
        %1763 = vmatpush1.msra.mxu0 0.0
        %1764 = vmatprep.subr.mxu0 0.0
        %1765 = vmatpush1.msra.mxu0 0.0
        %1766 = vmatprep.subr.mxu0 0.0
        %1767 = vmatpush1.msra.mxu0 0.0
        %1768 = vmatprep.subr.mxu0 0.0
        %1769 = vmatpush1.msra.mxu0 0.0
        %1770 = vmatprep.subr.mxu0 0.0
        %1771 = vmatpush1.msra.mxu0 0.0
        %1772 = vmatprep.subr.mxu0 0.0
        %1773 = vmatpush1.msra.mxu0 0.0
        %1774 = vmatprep.subr.mxu0 0.0
        %1775 = vmatpush1.msra.mxu0 0.0
        %1776 = vmatprep.subr.mxu0 0.0
        %1777 = vmatpush1.msra.mxu0 0.0
        %1778 = vmatprep.subr.mxu0 0.0
        %1779 = vmatpush1.msra.mxu0 0.0
        %1780 = vmatprep.subr.mxu0 0.0
        %1781 = vmatpush1.msra.mxu0 0.0
        %1782 = vmatprep.subr.mxu0 0.0
        %1783 = vmatpush1.msra.mxu0 0.0
        %1784 = vmatprep.subr.mxu0 0.0
        %1785 = vmatpush1.msra.mxu0 %v1675
        %1786 = vmatprep.subr.mxu0 0.0
        %1787 = vmatpush2.msra.mxu0 0.0
        %1788 = vmatprep.subr.mxu0 0.0
        %1789 = vmatpush2.msra.mxu0 0.0
        %1790 = vmatprep.subr.mxu0 0.0
        %1791 = vmatpush2.msra.mxu0 0.0
        %1792 = vmatprep.subr.mxu0 0.0
        %1793 = vmatpush2.msra.mxu0 0.0
        %1794 = vmatprep.subr.mxu0 0.0
        %1795 = vmatpush2.msra.mxu0 0.0
        %1796 = vmatprep.subr.mxu0 0.0
        %1797 = vmatpush2.msra.mxu0 0.0
        %1798 = vmatprep.subr.mxu0 0.0
        %1799 = vmatpush2.msra.mxu0 0.0
        %1800 = vmatprep.subr.mxu0 0.0
        %1801 = vmatpush2.msra.mxu0 0.0
        %1802 = vmatprep.subr.mxu0 0.0
        %1803 = vmatpush2.msra.mxu0 0.0
        %1804 = vmatprep.subr.mxu0 0.0
        %1805 = vmatpush2.msra.mxu0 0.0
        %1806 = vmatprep.subr.mxu0 0.0
        %1807 = vmatpush2.msra.mxu0 0.0
        %1808 = vmatprep.subr.mxu0 0.0
        %1809 = vmatpush2.msra.mxu0 0.0
        %1810 = vmatprep.subr.mxu0 0.0
        %1811 = vmatpush2.msra.mxu0 0.0
        %1812 = vmatprep.subr.mxu0 0.0
        %1813 = vmatpush2.msra.mxu0 0.0
        %1814 = vmatprep.subr.mxu0 0.0
        %1815 = vmatpush2.msra.mxu0 0.0
        %1816 = vmatprep.subr.mxu0 0.0
        %1817 = vmatpush2.msra.mxu0 0.0
        %1818 = vmatprep.mubr.f32.mxu0 0.0
        %1819 = vmatmul.mubr.f32.gmra.mxu0 %v1752
        %v1820 = vpop.f32.mrf.mxu0
        %v1821 = vadd.f32 0.0, %v1820
        %v1822 = vpop.f32.mrf.mxu0
        %1823 = vdwg.mxu0
        %v1825 = vsel %vm1468, %v507, 0
        %1827 = vmatprep.subr.mxu0 0.0
        %1828 = vmatpush1.msra.mxu0 0.0
        %1829 = vmatprep.subr.mxu0 0.0
        %1830 = vmatpush1.msra.mxu0 0.0
        %1831 = vmatprep.subr.mxu0 0.0
        %1832 = vmatpush1.msra.mxu0 0.0
        %1833 = vmatprep.subr.mxu0 0.0
        %1834 = vmatpush1.msra.mxu0 0.0
        %1835 = vmatprep.subr.mxu0 0.0
        %1836 = vmatpush1.msra.mxu0 0.0
        %1837 = vmatprep.subr.mxu0 0.0
        %1838 = vmatpush1.msra.mxu0 0.0
        %1839 = vmatprep.subr.mxu0 0.0
        %1840 = vmatpush1.msra.mxu0 0.0
        %1841 = vmatprep.subr.mxu0 0.0
        %1842 = vmatpush1.msra.mxu0 0.0
        %1843 = vmatprep.subr.mxu0 0.0
        %1844 = vmatpush1.msra.mxu0 0.0
        %1845 = vmatprep.subr.mxu0 0.0
        %1846 = vmatpush1.msra.mxu0 0.0
        %1847 = vmatprep.subr.mxu0 0.0
        %1848 = vmatpush1.msra.mxu0 0.0
        %1849 = vmatprep.subr.mxu0 0.0
        %1850 = vmatpush1.msra.mxu0 0.0
        %1851 = vmatprep.subr.mxu0 0.0
        %1852 = vmatpush1.msra.mxu0 0.0
        %1853 = vmatprep.subr.mxu0 0.0
        %1854 = vmatpush1.msra.mxu0 0.0
        %1855 = vmatprep.subr.mxu0 0.0
        %1856 = vmatpush1.msra.mxu0 0.0
        %1857 = vmatprep.subr.mxu0 0.0
        %1858 = vmatpush1.msra.mxu0 %v1676
        %1859 = vmatprep.subr.mxu0 0.0
        %1860 = vmatpush2.msra.mxu0 0.0
        %1861 = vmatprep.subr.mxu0 0.0
        %1862 = vmatpush2.msra.mxu0 0.0
        %1863 = vmatprep.subr.mxu0 0.0
        %1864 = vmatpush2.msra.mxu0 0.0
        %1865 = vmatprep.subr.mxu0 0.0
        %1866 = vmatpush2.msra.mxu0 0.0
        %1867 = vmatprep.subr.mxu0 0.0
        %1868 = vmatpush2.msra.mxu0 0.0
        %1869 = vmatprep.subr.mxu0 0.0
        %1870 = vmatpush2.msra.mxu0 0.0
        %1871 = vmatprep.subr.mxu0 0.0
        %1872 = vmatpush2.msra.mxu0 0.0
        %1873 = vmatprep.subr.mxu0 0.0
        %1874 = vmatpush2.msra.mxu0 0.0
        %1875 = vmatprep.subr.mxu0 0.0
        %1876 = vmatpush2.msra.mxu0 0.0
        %1877 = vmatprep.subr.mxu0 0.0
        %1878 = vmatpush2.msra.mxu0 0.0
        %1879 = vmatprep.subr.mxu0 0.0
        %1880 = vmatpush2.msra.mxu0 0.0
        %1881 = vmatprep.subr.mxu0 0.0
        %1882 = vmatpush2.msra.mxu0 0.0
        %1883 = vmatprep.subr.mxu0 0.0
        %1884 = vmatpush2.msra.mxu0 0.0
        %1885 = vmatprep.subr.mxu0 0.0
        %1886 = vmatpush2.msra.mxu0 0.0
        %1887 = vmatprep.subr.mxu0 0.0
        %1888 = vmatpush2.msra.mxu0 0.0
        %1889 = vmatprep.subr.mxu0 0.0
        %1890 = vmatpush2.msra.mxu0 0.0
        %1891 = vmatprep.mubr.f32.mxu0 0.0
        %1892 = vmatmul.mubr.f32.gmra.mxu0 %v1825
        %v1893 = vpop.f32.mrf.mxu0
        %v1894 = vadd.f32 0.0, %v1893
        %v1895 = vpop.f32.mrf.mxu0
        %1896 = vdwg.mxu0
        %v1898 = vsel %vm1468, %v508, 0
        %1900 = vmatprep.subr.mxu0 0.0
        %1901 = vmatpush1.msra.mxu0 0.0
        %1902 = vmatprep.subr.mxu0 0.0
        %1903 = vmatpush1.msra.mxu0 0.0
        %1904 = vmatprep.subr.mxu0 0.0
        %1905 = vmatpush1.msra.mxu0 0.0
        %1906 = vmatprep.subr.mxu0 0.0
        %1907 = vmatpush1.msra.mxu0 0.0
        %1908 = vmatprep.subr.mxu0 0.0
        %1909 = vmatpush1.msra.mxu0 0.0
        %1910 = vmatprep.subr.mxu0 0.0
        %1911 = vmatpush1.msra.mxu0 0.0
        %1912 = vmatprep.subr.mxu0 0.0
        %1913 = vmatpush1.msra.mxu0 0.0
        %1914 = vmatprep.subr.mxu0 0.0
        %1915 = vmatpush1.msra.mxu0 0.0
        %1916 = vmatprep.subr.mxu0 0.0
        %1917 = vmatpush1.msra.mxu0 0.0
        %1918 = vmatprep.subr.mxu0 0.0
        %1919 = vmatpush1.msra.mxu0 0.0
        %1920 = vmatprep.subr.mxu0 0.0
        %1921 = vmatpush1.msra.mxu0 0.0
        %1922 = vmatprep.subr.mxu0 0.0
        %1923 = vmatpush1.msra.mxu0 0.0
        %1924 = vmatprep.subr.mxu0 0.0
        %1925 = vmatpush1.msra.mxu0 0.0
        %1926 = vmatprep.subr.mxu0 0.0
        %1927 = vmatpush1.msra.mxu0 0.0
        %1928 = vmatprep.subr.mxu0 0.0
        %1929 = vmatpush1.msra.mxu0 0.0
        %1930 = vmatprep.subr.mxu0 0.0
        %1931 = vmatpush1.msra.mxu0 %v1677
        %1932 = vmatprep.subr.mxu0 0.0
        %1933 = vmatpush2.msra.mxu0 0.0
        %1934 = vmatprep.subr.mxu0 0.0
        %1935 = vmatpush2.msra.mxu0 0.0
        %1936 = vmatprep.subr.mxu0 0.0
        %1937 = vmatpush2.msra.mxu0 0.0
        %1938 = vmatprep.subr.mxu0 0.0
        %1939 = vmatpush2.msra.mxu0 0.0
        %1940 = vmatprep.subr.mxu0 0.0
        %1941 = vmatpush2.msra.mxu0 0.0
        %1942 = vmatprep.subr.mxu0 0.0
        %1943 = vmatpush2.msra.mxu0 0.0
        %1944 = vmatprep.subr.mxu0 0.0
        %1945 = vmatpush2.msra.mxu0 0.0
        %1946 = vmatprep.subr.mxu0 0.0
        %1947 = vmatpush2.msra.mxu0 0.0
        %1948 = vmatprep.subr.mxu0 0.0
        %1949 = vmatpush2.msra.mxu0 0.0
        %1950 = vmatprep.subr.mxu0 0.0
        %1951 = vmatpush2.msra.mxu0 0.0
        %1952 = vmatprep.subr.mxu0 0.0
        %1953 = vmatpush2.msra.mxu0 0.0
        %1954 = vmatprep.subr.mxu0 0.0
        %1955 = vmatpush2.msra.mxu0 0.0
        %1956 = vmatprep.subr.mxu0 0.0
        %1957 = vmatpush2.msra.mxu0 0.0
        %1958 = vmatprep.subr.mxu0 0.0
        %1959 = vmatpush2.msra.mxu0 0.0
        %1960 = vmatprep.subr.mxu0 0.0
        %1961 = vmatpush2.msra.mxu0 0.0
        %1962 = vmatprep.subr.mxu0 0.0
        %1963 = vmatpush2.msra.mxu0 0.0
        %1964 = vmatprep.mubr.f32.mxu0 0.0
        %1965 = vmatmul.mubr.f32.gmra.mxu0 %v1898
        %v1966 = vpop.f32.mrf.mxu0
        %v1967 = vadd.f32 0.0, %v1966
        %v1968 = vpop.f32.mrf.mxu0
        %1969 = vdwg.mxu0
        %v1970 = vld [vmem:[#allocation2] sm:$0xff]
        %v1971 = vld [vmem:[#allocation2 + $0x8] sm:$0xff]
        %v1972 = vld [vmem:[#allocation2 + $0x10] sm:$0xff]
        %v1973 = vld [vmem:[#allocation2 + $0x18] sm:$0xff]
        %v1975 = vsel %vm1468, %v1301, 0
        %1977 = vmatprep.subr.mxu0 0.0
        %1978 = vmatpush1.msra.mxu0 0.0
        %1979 = vmatprep.subr.mxu0 0.0
        %1980 = vmatpush1.msra.mxu0 0.0
        %1981 = vmatprep.subr.mxu0 0.0
        %1982 = vmatpush1.msra.mxu0 0.0
        %1983 = vmatprep.subr.mxu0 0.0
        %1984 = vmatpush1.msra.mxu0 0.0
        %1985 = vmatprep.subr.mxu0 0.0
        %1986 = vmatpush1.msra.mxu0 0.0
        %1987 = vmatprep.subr.mxu0 0.0
        %1988 = vmatpush1.msra.mxu0 0.0
        %1989 = vmatprep.subr.mxu0 0.0
        %1990 = vmatpush1.msra.mxu0 0.0
        %1991 = vmatprep.subr.mxu0 0.0
        %1992 = vmatpush1.msra.mxu0 0.0
        %1993 = vmatprep.subr.mxu0 0.0
        %1994 = vmatpush1.msra.mxu0 0.0
        %1995 = vmatprep.subr.mxu0 0.0
        %1996 = vmatpush1.msra.mxu0 0.0
        %1997 = vmatprep.subr.mxu0 0.0
        %1998 = vmatpush1.msra.mxu0 0.0
        %1999 = vmatprep.subr.mxu0 0.0
        %2000 = vmatpush1.msra.mxu0 0.0
        %2001 = vmatprep.subr.mxu0 0.0
        %2002 = vmatpush1.msra.mxu0 0.0
        %2003 = vmatprep.subr.mxu0 0.0
        %2004 = vmatpush1.msra.mxu0 0.0
        %2005 = vmatprep.subr.mxu0 0.0
        %2006 = vmatpush1.msra.mxu0 0.0
        %2007 = vmatprep.subr.mxu0 0.0
        %2008 = vmatpush1.msra.mxu0 %v1456
        %2009 = vmatprep.subr.mxu0 0.0
        %2010 = vmatpush2.msra.mxu0 0.0
        %2011 = vmatprep.subr.mxu0 0.0
        %2012 = vmatpush2.msra.mxu0 0.0
        %2013 = vmatprep.subr.mxu0 0.0
        %2014 = vmatpush2.msra.mxu0 0.0
        %2015 = vmatprep.subr.mxu0 0.0
        %2016 = vmatpush2.msra.mxu0 0.0
        %2017 = vmatprep.subr.mxu0 0.0
        %2018 = vmatpush2.msra.mxu0 0.0
        %2019 = vmatprep.subr.mxu0 0.0
        %2020 = vmatpush2.msra.mxu0 0.0
        %2021 = vmatprep.subr.mxu0 0.0
        %2022 = vmatpush2.msra.mxu0 0.0
        %2023 = vmatprep.subr.mxu0 0.0
        %2024 = vmatpush2.msra.mxu0 0.0
        %2025 = vmatprep.subr.mxu0 0.0
        %2026 = vmatpush2.msra.mxu0 0.0
        %2027 = vmatprep.subr.mxu0 0.0
        %2028 = vmatpush2.msra.mxu0 0.0
        %2029 = vmatprep.subr.mxu0 0.0
        %2030 = vmatpush2.msra.mxu0 0.0
        %2031 = vmatprep.subr.mxu0 0.0
        %2032 = vmatpush2.msra.mxu0 0.0
        %2033 = vmatprep.subr.mxu0 0.0
        %2034 = vmatpush2.msra.mxu0 0.0
        %2035 = vmatprep.subr.mxu0 0.0
        %2036 = vmatpush2.msra.mxu0 0.0
        %2037 = vmatprep.subr.mxu0 0.0
        %2038 = vmatpush2.msra.mxu0 0.0
        %2039 = vmatprep.subr.mxu0 0.0
        %2040 = vmatpush2.msra.mxu0 0.0
        %2041 = vmatprep.mubr.f32.mxu0 0.0
        %2042 = vmatmul.mubr.f32.gmra.mxu0 %v1975
        %v2043 = vpop.f32.mrf.mxu0
        %v2044 = vadd.f32 0.0, %v2043
        %v2045 = vpop.f32.mrf.mxu0
        %2046 = vdwg.mxu0
        %v2048 = vsel %vm1468, %v1302, 0
        %2050 = vmatprep.subr.mxu0 0.0
        %2051 = vmatpush1.msra.mxu0 0.0
        %2052 = vmatprep.subr.mxu0 0.0
        %2053 = vmatpush1.msra.mxu0 0.0
        %2054 = vmatprep.subr.mxu0 0.0
        %2055 = vmatpush1.msra.mxu0 0.0
        %2056 = vmatprep.subr.mxu0 0.0
        %2057 = vmatpush1.msra.mxu0 0.0
        %2058 = vmatprep.subr.mxu0 0.0
        %2059 = vmatpush1.msra.mxu0 0.0
        %2060 = vmatprep.subr.mxu0 0.0
        %2061 = vmatpush1.msra.mxu0 0.0
        %2062 = vmatprep.subr.mxu0 0.0
        %2063 = vmatpush1.msra.mxu0 0.0
        %2064 = vmatprep.subr.mxu0 0.0
        %2065 = vmatpush1.msra.mxu0 0.0
        %2066 = vmatprep.subr.mxu0 0.0
        %2067 = vmatpush1.msra.mxu0 0.0
        %2068 = vmatprep.subr.mxu0 0.0
        %2069 = vmatpush1.msra.mxu0 0.0
        %2070 = vmatprep.subr.mxu0 0.0
        %2071 = vmatpush1.msra.mxu0 0.0
        %2072 = vmatprep.subr.mxu0 0.0
        %2073 = vmatpush1.msra.mxu0 0.0
        %2074 = vmatprep.subr.mxu0 0.0
        %2075 = vmatpush1.msra.mxu0 0.0
        %2076 = vmatprep.subr.mxu0 0.0
        %2077 = vmatpush1.msra.mxu0 0.0
        %2078 = vmatprep.subr.mxu0 0.0
        %2079 = vmatpush1.msra.mxu0 0.0
        %2080 = vmatprep.subr.mxu0 0.0
        %2081 = vmatpush1.msra.mxu0 %v1457
        %2082 = vmatprep.subr.mxu0 0.0
        %2083 = vmatpush2.msra.mxu0 0.0
        %2084 = vmatprep.subr.mxu0 0.0
        %2085 = vmatpush2.msra.mxu0 0.0
        %2086 = vmatprep.subr.mxu0 0.0
        %2087 = vmatpush2.msra.mxu0 0.0
        %2088 = vmatprep.subr.mxu0 0.0
        %2089 = vmatpush2.msra.mxu0 0.0
        %2090 = vmatprep.subr.mxu0 0.0
        %2091 = vmatpush2.msra.mxu0 0.0
        %2092 = vmatprep.subr.mxu0 0.0
        %2093 = vmatpush2.msra.mxu0 0.0
        %2094 = vmatprep.subr.mxu0 0.0
        %2095 = vmatpush2.msra.mxu0 0.0
        %2096 = vmatprep.subr.mxu0 0.0
        %2097 = vmatpush2.msra.mxu0 0.0
        %2098 = vmatprep.subr.mxu0 0.0
        %2099 = vmatpush2.msra.mxu0 0.0
        %2100 = vmatprep.subr.mxu0 0.0
        %2101 = vmatpush2.msra.mxu0 0.0
        %2102 = vmatprep.subr.mxu0 0.0
        %2103 = vmatpush2.msra.mxu0 0.0
        %2104 = vmatprep.subr.mxu0 0.0
        %2105 = vmatpush2.msra.mxu0 0.0
        %2106 = vmatprep.subr.mxu0 0.0
        %2107 = vmatpush2.msra.mxu0 0.0
        %2108 = vmatprep.subr.mxu0 0.0
        %2109 = vmatpush2.msra.mxu0 0.0
        %2110 = vmatprep.subr.mxu0 0.0
        %2111 = vmatpush2.msra.mxu0 0.0
        %2112 = vmatprep.subr.mxu0 0.0
        %2113 = vmatpush2.msra.mxu0 0.0
        %2114 = vmatprep.mubr.f32.mxu0 0.0
        %2115 = vmatmul.mubr.f32.gmra.mxu0 %v2048
        %v2116 = vpop.f32.mrf.mxu0
        %v2117 = vadd.f32 0.0, %v2116
        %v2118 = vpop.f32.mrf.mxu0
        %2119 = vdwg.mxu0
        %v2121 = vsel %vm1468, %v1303, 0
        %2123 = vmatprep.subr.mxu0 0.0
        %2124 = vmatpush1.msra.mxu0 0.0
        %2125 = vmatprep.subr.mxu0 0.0
        %2126 = vmatpush1.msra.mxu0 0.0
        %2127 = vmatprep.subr.mxu0 0.0
        %2128 = vmatpush1.msra.mxu0 0.0
        %2129 = vmatprep.subr.mxu0 0.0
        %2130 = vmatpush1.msra.mxu0 0.0
        %2131 = vmatprep.subr.mxu0 0.0
        %2132 = vmatpush1.msra.mxu0 0.0
        %2133 = vmatprep.subr.mxu0 0.0
        %2134 = vmatpush1.msra.mxu0 0.0
        %2135 = vmatprep.subr.mxu0 0.0
        %2136 = vmatpush1.msra.mxu0 0.0
        %2137 = vmatprep.subr.mxu0 0.0
        %2138 = vmatpush1.msra.mxu0 0.0
        %2139 = vmatprep.subr.mxu0 0.0
        %2140 = vmatpush1.msra.mxu0 0.0
        %2141 = vmatprep.subr.mxu0 0.0
        %2142 = vmatpush1.msra.mxu0 0.0
        %2143 = vmatprep.subr.mxu0 0.0
        %2144 = vmatpush1.msra.mxu0 0.0
        %2145 = vmatprep.subr.mxu0 0.0
        %2146 = vmatpush1.msra.mxu0 0.0
        %2147 = vmatprep.subr.mxu0 0.0
        %2148 = vmatpush1.msra.mxu0 0.0
        %2149 = vmatprep.subr.mxu0 0.0
        %2150 = vmatpush1.msra.mxu0 0.0
        %2151 = vmatprep.subr.mxu0 0.0
        %2152 = vmatpush1.msra.mxu0 0.0
        %2153 = vmatprep.subr.mxu0 0.0
        %2154 = vmatpush1.msra.mxu0 %v1458
        %2155 = vmatprep.subr.mxu0 0.0
        %2156 = vmatpush2.msra.mxu0 0.0
        %2157 = vmatprep.subr.mxu0 0.0
        %2158 = vmatpush2.msra.mxu0 0.0
        %2159 = vmatprep.subr.mxu0 0.0
        %2160 = vmatpush2.msra.mxu0 0.0
        %2161 = vmatprep.subr.mxu0 0.0
        %2162 = vmatpush2.msra.mxu0 0.0
        %2163 = vmatprep.subr.mxu0 0.0
        %2164 = vmatpush2.msra.mxu0 0.0
        %2165 = vmatprep.subr.mxu0 0.0
        %2166 = vmatpush2.msra.mxu0 0.0
        %2167 = vmatprep.subr.mxu0 0.0
        %2168 = vmatpush2.msra.mxu0 0.0
        %2169 = vmatprep.subr.mxu0 0.0
        %2170 = vmatpush2.msra.mxu0 0.0
        %2171 = vmatprep.subr.mxu0 0.0
        %2172 = vmatpush2.msra.mxu0 0.0
        %2173 = vmatprep.subr.mxu0 0.0
        %2174 = vmatpush2.msra.mxu0 0.0
        %2175 = vmatprep.subr.mxu0 0.0
        %2176 = vmatpush2.msra.mxu0 0.0
        %2177 = vmatprep.subr.mxu0 0.0
        %2178 = vmatpush2.msra.mxu0 0.0
        %2179 = vmatprep.subr.mxu0 0.0
        %2180 = vmatpush2.msra.mxu0 0.0
        %2181 = vmatprep.subr.mxu0 0.0
        %2182 = vmatpush2.msra.mxu0 0.0
        %2183 = vmatprep.subr.mxu0 0.0
        %2184 = vmatpush2.msra.mxu0 0.0
        %2185 = vmatprep.subr.mxu0 0.0
        %2186 = vmatpush2.msra.mxu0 0.0
        %2187 = vmatprep.mubr.f32.mxu0 0.0
        %2188 = vmatmul.mubr.f32.gmra.mxu0 %v2121
        %v2189 = vpop.f32.mrf.mxu0
        %v2190 = vadd.f32 0.0, %v2189
        %v2191 = vpop.f32.mrf.mxu0
        %2192 = vdwg.mxu0
        %v2194 = vsel %vm1468, %v1304, 0
        %2196 = vmatprep.subr.mxu0 0.0
        %2197 = vmatpush1.msra.mxu0 0.0
        %2198 = vmatprep.subr.mxu0 0.0
        %2199 = vmatpush1.msra.mxu0 0.0
        %2200 = vmatprep.subr.mxu0 0.0
        %2201 = vmatpush1.msra.mxu0 0.0
        %2202 = vmatprep.subr.mxu0 0.0
        %2203 = vmatpush1.msra.mxu0 0.0
        %2204 = vmatprep.subr.mxu0 0.0
        %2205 = vmatpush1.msra.mxu0 0.0
        %2206 = vmatprep.subr.mxu0 0.0
        %2207 = vmatpush1.msra.mxu0 0.0
        %2208 = vmatprep.subr.mxu0 0.0
        %2209 = vmatpush1.msra.mxu0 0.0
        %2210 = vmatprep.subr.mxu0 0.0
        %2211 = vmatpush1.msra.mxu0 0.0
        %2212 = vmatprep.subr.mxu0 0.0
        %2213 = vmatpush1.msra.mxu0 0.0
        %2214 = vmatprep.subr.mxu0 0.0
        %2215 = vmatpush1.msra.mxu0 0.0
        %2216 = vmatprep.subr.mxu0 0.0
        %2217 = vmatpush1.msra.mxu0 0.0
        %2218 = vmatprep.subr.mxu0 0.0
        %2219 = vmatpush1.msra.mxu0 0.0
        %2220 = vmatprep.subr.mxu0 0.0
        %2221 = vmatpush1.msra.mxu0 0.0
        %2222 = vmatprep.subr.mxu0 0.0
        %2223 = vmatpush1.msra.mxu0 0.0
        %2224 = vmatprep.subr.mxu0 0.0
        %2225 = vmatpush1.msra.mxu0 0.0
        %2226 = vmatprep.subr.mxu0 0.0
        %2227 = vmatpush1.msra.mxu0 %v1459
        %2228 = vmatprep.subr.mxu0 0.0
        %2229 = vmatpush2.msra.mxu0 0.0
        %2230 = vmatprep.subr.mxu0 0.0
        %2231 = vmatpush2.msra.mxu0 0.0
        %2232 = vmatprep.subr.mxu0 0.0
        %2233 = vmatpush2.msra.mxu0 0.0
        %2234 = vmatprep.subr.mxu0 0.0
        %2235 = vmatpush2.msra.mxu0 0.0
        %2236 = vmatprep.subr.mxu0 0.0
        %2237 = vmatpush2.msra.mxu0 0.0
        %2238 = vmatprep.subr.mxu0 0.0
        %2239 = vmatpush2.msra.mxu0 0.0
        %2240 = vmatprep.subr.mxu0 0.0
        %2241 = vmatpush2.msra.mxu0 0.0
        %2242 = vmatprep.subr.mxu0 0.0
        %2243 = vmatpush2.msra.mxu0 0.0
        %2244 = vmatprep.subr.mxu0 0.0
        %2245 = vmatpush2.msra.mxu0 0.0
        %2246 = vmatprep.subr.mxu0 0.0
        %2247 = vmatpush2.msra.mxu0 0.0
        %2248 = vmatprep.subr.mxu0 0.0
        %2249 = vmatpush2.msra.mxu0 0.0
        %2250 = vmatprep.subr.mxu0 0.0
        %2251 = vmatpush2.msra.mxu0 0.0
        %2252 = vmatprep.subr.mxu0 0.0
        %2253 = vmatpush2.msra.mxu0 0.0
        %2254 = vmatprep.subr.mxu0 0.0
        %2255 = vmatpush2.msra.mxu0 0.0
        %2256 = vmatprep.subr.mxu0 0.0
        %2257 = vmatpush2.msra.mxu0 0.0
        %2258 = vmatprep.subr.mxu0 0.0
        %2259 = vmatpush2.msra.mxu0 0.0
        %2260 = vmatprep.mubr.f32.mxu0 0.0
        %2261 = vmatmul.mubr.f32.gmra.mxu0 %v2194
        %v2262 = vpop.f32.mrf.mxu0
        %v2263 = vadd.f32 0.0, %v2262
        %v2264 = vpop.f32.mrf.mxu0
        %2265 = vdwg.mxu0
        %v2266 = vadd.f32 %v1970, %v2044
        %v2267 = vadd.f32 %v1971, %v2117
        %v2268 = vadd.f32 %v1972, %v2190
        %v2269 = vadd.f32 %v1973, %v2263
        %2270 = vst.msk [vmem:[#allocation2] sm:$0xff] %vm1468, %v2266
        %2271 = vst.msk [vmem:[#allocation2 + $0x8] sm:$0xff] %vm1468, %v2267
        %2272 = vst.msk [vmem:[#allocation2 + $0x10] sm:$0xff] %vm1468, %v2268
        %2273 = vst.msk [vmem:[#allocation2 + $0x18] sm:$0xff] %vm1468, %v2269
        %v2275 = vsel %vm1468, %v1666, 0
        %v2278 = vsel %vm1472, %v1670, 0
        %2280 = vmatprep.subr.bf16.mxu0 0
        %2281 = vmatpush1.bf16.msra.mxu0 0
        %2282 = vmatprep.subr.bf16.mxu0 0
        %2283 = vmatpush1.bf16.msra.mxu0 0
        %2284 = vmatprep.subr.bf16.mxu0 0
        %2285 = vmatpush1.bf16.msra.mxu0 0
        %2286 = vmatprep.subr.bf16.mxu0 0
        %2287 = vmatpush1.bf16.msra.mxu0 0
        %2288 = vmatprep.subr.bf16.mxu0 0
        %2289 = vmatpush1.bf16.msra.mxu0 0
        %2290 = vmatprep.subr.bf16.mxu0 0
        %2291 = vmatpush1.bf16.msra.mxu0 0
        %2292 = vmatprep.subr.bf16.mxu0 0
        %2293 = vmatpush1.bf16.msra.mxu0 0
        %2294 = vmatprep.subr.bf16.mxu0 0
        %2295 = vmatpush1.bf16.msra.mxu0 %v2278
        %2296 = vmatprep.subr.bf16.mxu0 0
        %2297 = vmatpush2.bf16.msra.mxu0 0
        %2298 = vmatprep.subr.bf16.mxu0 0
        %2299 = vmatpush2.bf16.msra.mxu0 0
        %2300 = vmatprep.subr.bf16.mxu0 0
        %2301 = vmatpush2.bf16.msra.mxu0 0
        %2302 = vmatprep.subr.bf16.mxu0 0
        %2303 = vmatpush2.bf16.msra.mxu0 0
        %2304 = vmatprep.subr.bf16.mxu0 0
        %2305 = vmatpush2.bf16.msra.mxu0 0
        %2306 = vmatprep.subr.bf16.mxu0 0
        %2307 = vmatpush2.bf16.msra.mxu0 0
        %2308 = vmatprep.subr.bf16.mxu0 0
        %2309 = vmatpush2.bf16.msra.mxu0 0
        %2310 = vmatprep.subr.bf16.mxu0 0
        %2311 = vmatpush2.bf16.msra.mxu0 0
        %2312 = vmatprep.mubr.bf16.mxu0 0
        %2313 = vmatmul.mubr.bf16.gmra.mxu0 %v2275
        %v2314 = vpop.f32.mrf.mxu0
        %v2315 = vadd.f32 %v1748, %v2314
        %v2316 = vpop.f32.mrf.mxu0
        %v2317 = vpop.f32.mrf.mxu0
        %v2318 = vpop.f32.mrf.mxu0
        %2319 = vdwg.mxu0
        %v2321 = vsel %vm1468, %v1667, 0
        %v2324 = vsel %vm1472, %v1671, 0
        %2326 = vmatprep.subr.bf16.mxu0 0
        %2327 = vmatpush1.bf16.msra.mxu0 0
        %2328 = vmatprep.subr.bf16.mxu0 0
        %2329 = vmatpush1.bf16.msra.mxu0 0
        %2330 = vmatprep.subr.bf16.mxu0 0
        %2331 = vmatpush1.bf16.msra.mxu0 0
        %2332 = vmatprep.subr.bf16.mxu0 0
        %2333 = vmatpush1.bf16.msra.mxu0 0
        %2334 = vmatprep.subr.bf16.mxu0 0
        %2335 = vmatpush1.bf16.msra.mxu0 0
        %2336 = vmatprep.subr.bf16.mxu0 0
        %2337 = vmatpush1.bf16.msra.mxu0 0
        %2338 = vmatprep.subr.bf16.mxu0 0
        %2339 = vmatpush1.bf16.msra.mxu0 0
        %2340 = vmatprep.subr.bf16.mxu0 0
        %2341 = vmatpush1.bf16.msra.mxu0 %v2324
        %2342 = vmatprep.subr.bf16.mxu0 0
        %2343 = vmatpush2.bf16.msra.mxu0 0
        %2344 = vmatprep.subr.bf16.mxu0 0
        %2345 = vmatpush2.bf16.msra.mxu0 0
        %2346 = vmatprep.subr.bf16.mxu0 0
        %2347 = vmatpush2.bf16.msra.mxu0 0
        %2348 = vmatprep.subr.bf16.mxu0 0
        %2349 = vmatpush2.bf16.msra.mxu0 0
        %2350 = vmatprep.subr.bf16.mxu0 0
        %2351 = vmatpush2.bf16.msra.mxu0 0
        %2352 = vmatprep.subr.bf16.mxu0 0
        %2353 = vmatpush2.bf16.msra.mxu0 0
        %2354 = vmatprep.subr.bf16.mxu0 0
        %2355 = vmatpush2.bf16.msra.mxu0 0
        %2356 = vmatprep.subr.bf16.mxu0 0
        %2357 = vmatpush2.bf16.msra.mxu0 0
        %2358 = vmatprep.mubr.bf16.mxu0 0
        %2359 = vmatmul.mubr.bf16.gmra.mxu0 %v2321
        %v2360 = vpop.f32.mrf.mxu0
        %v2361 = vadd.f32 %v1821, %v2360
        %v2362 = vpop.f32.mrf.mxu0
        %v2363 = vpop.f32.mrf.mxu0
        %v2364 = vpop.f32.mrf.mxu0
        %2365 = vdwg.mxu0
        %v2367 = vsel %vm1468, %v1668, 0
        %v2370 = vsel %vm1472, %v1672, 0
        %2372 = vmatprep.subr.bf16.mxu0 0
        %2373 = vmatpush1.bf16.msra.mxu0 0
        %2374 = vmatprep.subr.bf16.mxu0 0
        %2375 = vmatpush1.bf16.msra.mxu0 0
        %2376 = vmatprep.subr.bf16.mxu0 0
        %2377 = vmatpush1.bf16.msra.mxu0 0
        %2378 = vmatprep.subr.bf16.mxu0 0
        %2379 = vmatpush1.bf16.msra.mxu0 0
        %2380 = vmatprep.subr.bf16.mxu0 0
        %2381 = vmatpush1.bf16.msra.mxu0 0
        %2382 = vmatprep.subr.bf16.mxu0 0
        %2383 = vmatpush1.bf16.msra.mxu0 0
        %2384 = vmatprep.subr.bf16.mxu0 0
        %2385 = vmatpush1.bf16.msra.mxu0 0
        %2386 = vmatprep.subr.bf16.mxu0 0
        %2387 = vmatpush1.bf16.msra.mxu0 %v2370
        %2388 = vmatprep.subr.bf16.mxu0 0
        %2389 = vmatpush2.bf16.msra.mxu0 0
        %2390 = vmatprep.subr.bf16.mxu0 0
        %2391 = vmatpush2.bf16.msra.mxu0 0
        %2392 = vmatprep.subr.bf16.mxu0 0
        %2393 = vmatpush2.bf16.msra.mxu0 0
        %2394 = vmatprep.subr.bf16.mxu0 0
        %2395 = vmatpush2.bf16.msra.mxu0 0
        %2396 = vmatprep.subr.bf16.mxu0 0
        %2397 = vmatpush2.bf16.msra.mxu0 0
        %2398 = vmatprep.subr.bf16.mxu0 0
        %2399 = vmatpush2.bf16.msra.mxu0 0
        %2400 = vmatprep.subr.bf16.mxu0 0
        %2401 = vmatpush2.bf16.msra.mxu0 0
        %2402 = vmatprep.subr.bf16.mxu0 0
        %2403 = vmatpush2.bf16.msra.mxu0 0
        %2404 = vmatprep.mubr.bf16.mxu0 0
        %2405 = vmatmul.mubr.bf16.gmra.mxu0 %v2367
        %v2406 = vpop.f32.mrf.mxu0
        %v2407 = vadd.f32 %v1894, %v2406
        %v2408 = vpop.f32.mrf.mxu0
        %v2409 = vpop.f32.mrf.mxu0
        %v2410 = vpop.f32.mrf.mxu0
        %2411 = vdwg.mxu0
        %v2413 = vsel %vm1468, %v1669, 0
        %v2416 = vsel %vm1472, %v1673, 0
        %2418 = vmatprep.subr.bf16.mxu0 0
        %2419 = vmatpush1.bf16.msra.mxu0 0
        %2420 = vmatprep.subr.bf16.mxu0 0
        %2421 = vmatpush1.bf16.msra.mxu0 0
        %2422 = vmatprep.subr.bf16.mxu0 0
        %2423 = vmatpush1.bf16.msra.mxu0 0
        %2424 = vmatprep.subr.bf16.mxu0 0
        %2425 = vmatpush1.bf16.msra.mxu0 0
        %2426 = vmatprep.subr.bf16.mxu0 0
        %2427 = vmatpush1.bf16.msra.mxu0 0
        %2428 = vmatprep.subr.bf16.mxu0 0
        %2429 = vmatpush1.bf16.msra.mxu0 0
        %2430 = vmatprep.subr.bf16.mxu0 0
        %2431 = vmatpush1.bf16.msra.mxu0 0
        %2432 = vmatprep.subr.bf16.mxu0 0
        %2433 = vmatpush1.bf16.msra.mxu0 %v2416
        %2434 = vmatprep.subr.bf16.mxu0 0
        %2435 = vmatpush2.bf16.msra.mxu0 0
        %2436 = vmatprep.subr.bf16.mxu0 0
        %2437 = vmatpush2.bf16.msra.mxu0 0
        %2438 = vmatprep.subr.bf16.mxu0 0
        %2439 = vmatpush2.bf16.msra.mxu0 0
        %2440 = vmatprep.subr.bf16.mxu0 0
        %2441 = vmatpush2.bf16.msra.mxu0 0
        %2442 = vmatprep.subr.bf16.mxu0 0
        %2443 = vmatpush2.bf16.msra.mxu0 0
        %2444 = vmatprep.subr.bf16.mxu0 0
        %2445 = vmatpush2.bf16.msra.mxu0 0
        %2446 = vmatprep.subr.bf16.mxu0 0
        %2447 = vmatpush2.bf16.msra.mxu0 0
        %2448 = vmatprep.subr.bf16.mxu0 0
        %2449 = vmatpush2.bf16.msra.mxu0 0
        %2450 = vmatprep.mubr.bf16.mxu0 0
        %2451 = vmatmul.mubr.bf16.gmra.mxu0 %v2413
        %v2452 = vpop.f32.mrf.mxu0
        %v2453 = vadd.f32 %v1967, %v2452
        %v2454 = vpop.f32.mrf.mxu0
        %v2455 = vpop.f32.mrf.mxu0
        %v2456 = vpop.f32.mrf.mxu0
        %2457 = vdwg.mxu0
        %v2458 = vcombine.low %v2315, %v2407
        %v2459 = vcombine.high %v2315, %v2407
        %v2461 = vunpack.c.l.s4 1983009808
        %v2462 = vunpack.c.0.s8 %v2461
        %v2463 = vlaneseq
        %v2464 = vshrl.u32 %v2463, 7
        %v2465 = vsub.s32 %v2462, %v2464
        %v2466 = vrot.slane %v2458, %v2465
        %v2468 = vunpack.c.l.s4 1983009808
        %v2469 = vunpack.c.0.s8 %v2468
        %v2470 = vlaneseq
        %v2471 = vshrl.u32 %v2470, 7
        %v2472 = vsub.s32 %v2469, %v2471
        %v2473 = vrot.slane %v2459, %v2472
        %v2474 = vcombine.low %v2361, %v2453
        %v2475 = vcombine.high %v2361, %v2453
        %v2477 = vunpack.c.l.s4 1983009808
        %v2478 = vunpack.c.0.s8 %v2477
        %v2479 = vlaneseq
        %v2480 = vshrl.u32 %v2479, 7
        %v2481 = vsub.s32 %v2478, %v2480
        %v2482 = vrot.slane %v2474, %v2481
        %v2484 = vunpack.c.l.s4 1983009808
        %v2485 = vunpack.c.0.s8 %v2484
        %v2486 = vlaneseq
        %v2487 = vshrl.u32 %v2486, 7
        %v2488 = vsub.s32 %v2485, %v2487
        %v2489 = vrot.slane %v2475, %v2488
        %v2490 = vcombine.low %v2466, %v2482
        %v2491 = vcombine.high %v2466, %v2482
        %v2493 = vunpack.c.l.s4 1934713408
        %v2494 = vunpack.c.0.s8 %v2493
        %v2495 = vlaneseq
        %v2496 = vshrl.u32 %v2495, 7
        %v2497 = vsub.s32 %v2494, %v2496
        %v2498 = vrot.slane %v2490, %v2497
        %v2500 = vunpack.c.l.s4 1934713408
        %v2501 = vunpack.c.0.s8 %v2500
        %v2502 = vlaneseq
        %v2503 = vshrl.u32 %v2502, 7
        %v2504 = vsub.s32 %v2501, %v2503
        %v2505 = vrot.slane %v2491, %v2504
        %v2506 = vcombine.low %v2473, %v2489
        %v2507 = vcombine.high %v2473, %v2489
        %v2509 = vunpack.c.l.s4 1934713408
        %v2510 = vunpack.c.0.s8 %v2509
        %v2511 = vlaneseq
        %v2512 = vshrl.u32 %v2511, 7
        %v2513 = vsub.s32 %v2510, %v2512
        %v2514 = vrot.slane %v2506, %v2513
        %v2516 = vunpack.c.l.s4 1934713408
        %v2517 = vunpack.c.0.s8 %v2516
        %v2518 = vlaneseq
        %v2519 = vshrl.u32 %v2518, 7
        %v2520 = vsub.s32 %v2517, %v2519
        %v2521 = vrot.slane %v2507, %v2520
        %v2522 = vcombine.high %v2498, 0.0
        %v2523 = vcombine.high %v2505, 0.0
        %v2524 = vcombine.high %v2514, 0.0
        %v2525 = vcombine.high %v2521, 0.0
        %v2526 = vcombine.low %v2498, %v2505
        %v2528 = vunpack.c.l.s4 1983009808
        %v2529 = vunpack.c.0.s8 %v2528
        %v2530 = vlaneseq
        %v2531 = vshrl.u32 %v2530, 7
        %v2532 = vsub.s32 %v2529, %v2531
        %v2533 = vrot.slane %v2526, %v2532
        %v2534 = vcombine.low %v2522, %v2523
        %v2536 = vunpack.c.l.s4 1983009808
        %v2537 = vunpack.c.0.s8 %v2536
        %v2538 = vlaneseq
        %v2539 = vshrl.u32 %v2538, 7
        %v2540 = vsub.s32 %v2537, %v2539
        %v2541 = vrot.slane %v2534, %v2540
        %v2542 = vcombine.low %v2514, %v2521
        %v2544 = vunpack.c.l.s4 1983009808
        %v2545 = vunpack.c.0.s8 %v2544
        %v2546 = vlaneseq
        %v2547 = vshrl.u32 %v2546, 7
        %v2548 = vsub.s32 %v2545, %v2547
        %v2549 = vrot.slane %v2542, %v2548
        %v2550 = vcombine.low %v2524, %v2525
        %v2552 = vunpack.c.l.s4 1983009808
        %v2553 = vunpack.c.0.s8 %v2552
        %v2554 = vlaneseq
        %v2555 = vshrl.u32 %v2554, 7
        %v2556 = vsub.s32 %v2553, %v2555
        %v2557 = vrot.slane %v2550, %v2556
        %v2558 = vcombine.low %v2533, %v2541
        %v2559 = vcombine.high %v2533, %v2541
        %v2561 = vunpack.c.l.s4 1934713408
        %v2562 = vunpack.c.0.s8 %v2561
        %v2563 = vlaneseq
        %v2564 = vshrl.u32 %v2563, 7
        %v2565 = vsub.s32 %v2562, %v2564
        %v2566 = vrot.slane %v2558, %v2565
        %v2568 = vunpack.c.l.s4 1934713408
        %v2569 = vunpack.c.0.s8 %v2568
        %v2570 = vlaneseq
        %v2571 = vshrl.u32 %v2570, 7
        %v2572 = vsub.s32 %v2569, %v2571
        %v2573 = vrot.slane %v2559, %v2572
        %v2574 = vcombine.low %v2549, %v2557
        %v2575 = vcombine.high %v2549, %v2557
        %v2577 = vunpack.c.l.s4 1934713408
        %v2578 = vunpack.c.0.s8 %v2577
        %v2579 = vlaneseq
        %v2580 = vshrl.u32 %v2579, 7
        %v2581 = vsub.s32 %v2578, %v2580
        %v2582 = vrot.slane %v2574, %v2581
        %v2584 = vunpack.c.l.s4 1934713408
        %v2585 = vunpack.c.0.s8 %v2584
        %v2586 = vlaneseq
        %v2587 = vshrl.u32 %v2586, 7
        %v2588 = vsub.s32 %v2585, %v2587
        %v2589 = vrot.slane %v2575, %v2588
        %v2590 = vcombine.low %v2566, %v2582
        %v2591 = vcombine.high %v2566, %v2582
        %v2592 = vcombine.low %v2573, %v2589
        %v2593 = vcombine.high %v2573, %v2589
        %2595 = vrot.lane.b32.xlu0 %v2591, 8
        %v2596 = vpop.permute.xlu0 %2595
        %2599 = vrot.lane.b32.xlu0 %v2592, 16
        %v2600 = vpop.permute.xlu0 %2599
        %2603 = vrot.lane.b32.xlu0 %v2593, 24
        %v2604 = vpop.permute.xlu0 %2603
        %v2606 = vsel %vm1468, %v2590, %v2596
        %vm2607 = vcmask 130048
        %v2608 = vsel %vm2607, %v2606, %v2600
        %vm2609 = vcmask 195584
        %v2610 = vsel %vm2609, %v2608, %v2604
        %v2611 = vmul.f32 %v2610, %v2610
        %v2612 = vsel %vm287, %v2611, 0.0
        %2613 = vadd.xlane.f32.xlu0 %v2612
        %v2614 = vpop.xlane.xlu0 %2613
        %v2615 = vmul.f32 %v2614, %v291
        %v2616 = vadd.f32 %v2615, 1e-06
        %v2617 = vrsqrt.pop %v2616
        %v2618 = vmul.f32 %v2610, %v2617
        %2619 = vrot.lane.b32.xlu0 %v351, 32
        %v2620 = vpop.permute.xlu0 %2619
        %v2622 = vmul.f32 %v2618, %v2620
        %v2623 = vpack.c.bf16 %v2622, %v2622
        %v2624 = vld [vmem:[%s2] sm:$0xf]
        %v2625 = vld [vmem:[%s2 + $0x4] sm:$0xf]
        %v2626 = vld [vmem:[%s2 + $0x8] sm:$0xf]
        %v2627 = vld [vmem:[%s2 + $0xc] sm:$0xf]
        %v2632 = vunpack.c.l.b16 %v2624
        %v2633 = vunpack.c.l.b16 %v2625
        %v2634 = vunpack.c.l.b16 %v2626
        %v2635 = vunpack.c.l.b16 %v2627
        %v2636 = vpack.c.b16 %v2633, %v2632
        %v2637 = vpack.c.b16 %v2635, %v2634
        %v2641 = vsel %vm287, %v2623, 0
        %2643 = vmatprep.subr.bf16.mxu0 0
        %2644 = vmatpush1.bf16.msra.mxu0 0
        %2645 = vmatprep.subr.bf16.mxu0 0
        %2646 = vmatpush1.bf16.msra.mxu0 0
        %2647 = vmatprep.subr.bf16.mxu0 0
        %2648 = vmatpush1.bf16.msra.mxu0 0
        %2649 = vmatprep.subr.bf16.mxu0 0
        %2650 = vmatpush1.bf16.msra.mxu0 0
        %2651 = vmatprep.subr.bf16.mxu0 0
        %2652 = vmatpush1.bf16.msra.mxu0 0
        %2653 = vmatprep.subr.bf16.mxu0 0
        %2654 = vmatpush1.bf16.msra.mxu0 0
        %2655 = vmatprep.subr.bf16.mxu0 0
        %2656 = vmatpush1.bf16.msra.mxu0 %v2637
        %2657 = vmatprep.subr.bf16.mxu0 0
        %2658 = vmatpush1.bf16.msra.mxu0 %v2636
        %2659 = vmatprep.subr.bf16.mxu0 0
        %2660 = vmatpush2.bf16.msra.mxu0 0
        %2661 = vmatprep.subr.bf16.mxu0 0
        %2662 = vmatpush2.bf16.msra.mxu0 0
        %2663 = vmatprep.subr.bf16.mxu0 0
        %2664 = vmatpush2.bf16.msra.mxu0 0
        %2665 = vmatprep.subr.bf16.mxu0 0
        %2666 = vmatpush2.bf16.msra.mxu0 0
        %2667 = vmatprep.subr.bf16.mxu0 0
        %2668 = vmatpush2.bf16.msra.mxu0 0
        %2669 = vmatprep.subr.bf16.mxu0 0
        %2670 = vmatpush2.bf16.msra.mxu0 0
        %2671 = vmatprep.subr.bf16.mxu0 0
        %2672 = vmatpush2.bf16.msra.mxu0 0
        %2673 = vmatprep.subr.bf16.mxu0 0
        %2674 = vmatpush2.bf16.msra.mxu0 0
        %2675 = vmatprep.mubr.bf16.mxu0 0
        %2676 = vmatmul.mubr.bf16.gmra.mxu0 %v2641
        %v2677 = vpop.f32.mrf.mxu0
        %v2678 = vadd.f32 0.0, %v2677
        %v2679 = vpop.f32.mrf.mxu0
        %v2680 = vpop.f32.mrf.mxu0
        %v2681 = vpop.f32.mrf.mxu0
        %2682 = vdwg.mxu0
        %v2683 = vadd.f32 %v285, %v2678
        %v2684 = vmul.f32 %v2683, %v2683
        %v2685 = vsel %vm287, %v2684, 0.0
        %2686 = vadd.xlane.f32.xlu0 %v2685
        %v2687 = vpop.xlane.xlu0 %2686
        %v2688 = vmul.f32 %v2687, %v291
        %v2689 = vadd.f32 %v2688, 1e-06
        %v2690 = vrsqrt.pop %v2689
        %v2691 = vmul.f32 %v2683, %v2690
        %v2692 = vpack.c.bf16 %v2691, %v2691
        %v2693 = vld [vmem:[%s3] sm:$0xf]
        %v2694 = vld [vmem:[%s3 + $0x4] sm:$0xf]
        %v2695 = vld [vmem:[%s3 + $0x8] sm:$0xf]
        %v2696 = vld [vmem:[%s3 + $0xc] sm:$0xf]
        %v2701 = vunpack.c.l.b16 %v2693
        %v2702 = vunpack.c.l.b16 %v2694
        %v2703 = vunpack.c.l.b16 %v2695
        %v2704 = vunpack.c.l.b16 %v2696
        %v2705 = vpack.c.b16 %v2702, %v2701
        %v2706 = vpack.c.b16 %v2704, %v2703
        %v2710 = vsel %vm287, %v2692, 0
        %2712 = vmatprep.subr.bf16.mxu0 0
        %2713 = vmatpush1.bf16.msra.mxu0 0
        %2714 = vmatprep.subr.bf16.mxu0 0
        %2715 = vmatpush1.bf16.msra.mxu0 0
        %2716 = vmatprep.subr.bf16.mxu0 0
        %2717 = vmatpush1.bf16.msra.mxu0 0
        %2718 = vmatprep.subr.bf16.mxu0 0
        %2719 = vmatpush1.bf16.msra.mxu0 0
        %2720 = vmatprep.subr.bf16.mxu0 0
        %2721 = vmatpush1.bf16.msra.mxu0 0
        %2722 = vmatprep.subr.bf16.mxu0 0
        %2723 = vmatpush1.bf16.msra.mxu0 0
        %2724 = vmatprep.subr.bf16.mxu0 0
        %2725 = vmatpush1.bf16.msra.mxu0 %v2706
        %2726 = vmatprep.subr.bf16.mxu0 0
        %2727 = vmatpush1.bf16.msra.mxu0 %v2705
        %2728 = vmatprep.subr.bf16.mxu0 0
        %2729 = vmatpush2.bf16.msra.mxu0 0
        %2730 = vmatprep.subr.bf16.mxu0 0
        %2731 = vmatpush2.bf16.msra.mxu0 0
        %2732 = vmatprep.subr.bf16.mxu0 0
        %2733 = vmatpush2.bf16.msra.mxu0 0
        %2734 = vmatprep.subr.bf16.mxu0 0
        %2735 = vmatpush2.bf16.msra.mxu0 0
        %2736 = vmatprep.subr.bf16.mxu0 0
        %2737 = vmatpush2.bf16.msra.mxu0 0
        %2738 = vmatprep.subr.bf16.mxu0 0
        %2739 = vmatpush2.bf16.msra.mxu0 0
        %2740 = vmatprep.subr.bf16.mxu0 0
        %2741 = vmatpush2.bf16.msra.mxu0 0
        %2742 = vmatprep.subr.bf16.mxu0 0
        %2743 = vmatpush2.bf16.msra.mxu0 0
        %2744 = vmatprep.mubr.bf16.mxu0 0
        %2745 = vmatmul.mubr.bf16.gmra.mxu0 %v2710
        %v2746 = vpop.f32.mrf.mxu0
        %v2747 = vadd.f32 0.0, %v2746
        %v2748 = vpop.f32.mrf.mxu0
        %v2749 = vpop.f32.mrf.mxu0
        %v2750 = vpop.f32.mrf.mxu0
        %2751 = vdwg.mxu0
        %v2752 = vld [vmem:[%s4] sm:$0xf]
        %v2753 = vld [vmem:[%s4 + $0x4] sm:$0xf]
        %v2754 = vld [vmem:[%s4 + $0x8] sm:$0xf]
        %v2755 = vld [vmem:[%s4 + $0xc] sm:$0xf]
        %v2760 = vunpack.c.l.b16 %v2752
        %v2761 = vunpack.c.l.b16 %v2753
        %v2762 = vunpack.c.l.b16 %v2754
        %v2763 = vunpack.c.l.b16 %v2755
        %v2764 = vpack.c.b16 %v2761, %v2760
        %v2765 = vpack.c.b16 %v2763, %v2762
        %2768 = vmatprep.subr.bf16.mxu0 0
        %2769 = vmatpush1.bf16.msra.mxu0 0
        %2770 = vmatprep.subr.bf16.mxu0 0
        %2771 = vmatpush1.bf16.msra.mxu0 0
        %2772 = vmatprep.subr.bf16.mxu0 0
        %2773 = vmatpush1.bf16.msra.mxu0 0
        %2774 = vmatprep.subr.bf16.mxu0 0
        %2775 = vmatpush1.bf16.msra.mxu0 0
        %2776 = vmatprep.subr.bf16.mxu0 0
        %2777 = vmatpush1.bf16.msra.mxu0 0
        %2778 = vmatprep.subr.bf16.mxu0 0
        %2779 = vmatpush1.bf16.msra.mxu0 0
        %2780 = vmatprep.subr.bf16.mxu0 0
        %2781 = vmatpush1.bf16.msra.mxu0 %v2765
        %2782 = vmatprep.subr.bf16.mxu0 0
        %2783 = vmatpush1.bf16.msra.mxu0 %v2764
        %2784 = vmatprep.subr.bf16.mxu0 0
        %2785 = vmatpush2.bf16.msra.mxu0 0
        %2786 = vmatprep.subr.bf16.mxu0 0
        %2787 = vmatpush2.bf16.msra.mxu0 0
        %2788 = vmatprep.subr.bf16.mxu0 0
        %2789 = vmatpush2.bf16.msra.mxu0 0
        %2790 = vmatprep.subr.bf16.mxu0 0
        %2791 = vmatpush2.bf16.msra.mxu0 0
        %2792 = vmatprep.subr.bf16.mxu0 0
        %2793 = vmatpush2.bf16.msra.mxu0 0
        %2794 = vmatprep.subr.bf16.mxu0 0
        %2795 = vmatpush2.bf16.msra.mxu0 0
        %2796 = vmatprep.subr.bf16.mxu0 0
        %2797 = vmatpush2.bf16.msra.mxu0 0
        %2798 = vmatprep.subr.bf16.mxu0 0
        %2799 = vmatpush2.bf16.msra.mxu0 0
        %2800 = vmatprep.mubr.bf16.mxu0 0
        %2801 = vmatmul.mubr.bf16.gmra.mxu0 %v2710
        %v2802 = vpop.f32.mrf.mxu0
        %v2803 = vadd.f32 0.0, %v2802
        %v2804 = vpop.f32.mrf.mxu0
        %v2805 = vpop.f32.mrf.mxu0
        %v2806 = vpop.f32.mrf.mxu0
        %2807 = vdwg.mxu0
        %v2808 = vmul.f32 %v2747, %v2803
        %v2809 = vpack.c.bf16 %v2808, %v2808
        %v2810 = vld [vmem:[%s5] sm:$0xf]
        %v2811 = vld [vmem:[%s5 + $0x4] sm:$0xf]
        %v2812 = vld [vmem:[%s5 + $0x8] sm:$0xf]
        %v2813 = vld [vmem:[%s5 + $0xc] sm:$0xf]
        %v2818 = vunpack.c.l.b16 %v2810
        %v2819 = vunpack.c.l.b16 %v2811
        %v2820 = vunpack.c.l.b16 %v2812
        %v2821 = vunpack.c.l.b16 %v2813
        %v2822 = vpack.c.b16 %v2819, %v2818
        %v2823 = vpack.c.b16 %v2821, %v2820
        %v2827 = vsel %vm287, %v2809, 0
        %2829 = vmatprep.subr.bf16.mxu0 0
        %2830 = vmatpush1.bf16.msra.mxu0 0
        %2831 = vmatprep.subr.bf16.mxu0 0
        %2832 = vmatpush1.bf16.msra.mxu0 0
        %2833 = vmatprep.subr.bf16.mxu0 0
        %2834 = vmatpush1.bf16.msra.mxu0 0
        %2835 = vmatprep.subr.bf16.mxu0 0
        %2836 = vmatpush1.bf16.msra.mxu0 0
        %2837 = vmatprep.subr.bf16.mxu0 0
        %2838 = vmatpush1.bf16.msra.mxu0 0
        %2839 = vmatprep.subr.bf16.mxu0 0
        %2840 = vmatpush1.bf16.msra.mxu0 0
        %2841 = vmatprep.subr.bf16.mxu0 0
        %2842 = vmatpush1.bf16.msra.mxu0 %v2823
        %2843 = vmatprep.subr.bf16.mxu0 0
        %2844 = vmatpush1.bf16.msra.mxu0 %v2822
        %2845 = vmatprep.subr.bf16.mxu0 0
        %2846 = vmatpush2.bf16.msra.mxu0 0
        %2847 = vmatprep.subr.bf16.mxu0 0
        %2848 = vmatpush2.bf16.msra.mxu0 0
        %2849 = vmatprep.subr.bf16.mxu0 0
        %2850 = vmatpush2.bf16.msra.mxu0 0
        %2851 = vmatprep.subr.bf16.mxu0 0
        %2852 = vmatpush2.bf16.msra.mxu0 0
        %2853 = vmatprep.subr.bf16.mxu0 0
        %2854 = vmatpush2.bf16.msra.mxu0 0
        %2855 = vmatprep.subr.bf16.mxu0 0
        %2856 = vmatpush2.bf16.msra.mxu0 0
        %2857 = vmatprep.subr.bf16.mxu0 0
        %2858 = vmatpush2.bf16.msra.mxu0 0
        %2859 = vmatprep.subr.bf16.mxu0 0
        %2860 = vmatpush2.bf16.msra.mxu0 0
        %2861 = vmatprep.mubr.bf16.mxu0 0
        %2862 = vmatmul.mubr.bf16.gmra.mxu0 %v2827
        %v2863 = vpop.f32.mrf.mxu0
        %v2864 = vadd.f32 0.0, %v2863
        %v2865 = vpop.f32.mrf.mxu0
        %v2866 = vpop.f32.mrf.mxu0
        %v2867 = vpop.f32.mrf.mxu0
        %2868 = vdwg.mxu0
        %v2869 = vadd.f32 %v2683, %v2864
        %2870 = vst.msk [vmem:[%s266] sm:$0xff] %vm287, %v2869
        %s2871 = sand.u32 %s175, 1
        %s2872 = scalar_lea.sflag [#allocation4], %s2871
        %s2873 = sand.u32 %s175, 1
        %s2874 = smul.addr %s2873, 8
        %s2875 = scalar_lea.vmem [#allocation3], %s2874
        // Predicated region
        $region49: #{transnormer_decoder_layer.1} parent=43 // pred_check
          %p2876 = pneg %p185
        $region50: #{transnormer_decoder_layer.1} parent=43 // pred_check_branch
          %2878 = sbr.rel (%p2876) target = $region52
        $region51: #{transnormer_decoder_layer.1} parent=43 // pred_region
          %s2880 = ssub.s32 128, 128
          %2881 = vsyncadd %s2872, %s2880
          %s2882 = smul.addr %s24, 2
          %s2883 = sadd.s32 %s25, %s2882
          %s2884 = smul.addr %s2883, 128
          %s2885 = scalar_lea.hbm %s6, %s2884
          %s2887 = sshll.u32 %s2875, 4
          %s2888 = int_to_ptr.vmem [resolvable:$true] %s2887
          %2890 = dma.vmem_to_hbm [thread:$0]  %s2888, 128, %s2885, %s2872
        $region52: #{transnormer_decoder_layer.1} parent=43 // pred_fallthru
          _
      $region44: #{transnormer_decoder_layer.1} parent=5 // pred_fallthru
        _
      %p2891 = scmp.le.s32.totalorder 2, %s15
      // Predicated region
      $region53: #{transnormer_decoder_layer.1} parent=5 // pred_check
        %p2892 = pneg %p2891
      $region54: #{transnormer_decoder_layer.1} parent=5 // pred_check_branch
        %2894 = sbr.rel (%p2892) target = $region56
      $region55: #{transnormer_decoder_layer.1} parent=5 // pred_region
        %s2895 = ssub.s32 %s15, 2
        // Predicated region
        $region57: #{transnormer_decoder_layer.1} parent=55 // pred_check
          %p2896 = pneg %p191
        $region58: #{transnormer_decoder_layer.1} parent=55 // pred_check_branch
          %2898 = sbr.rel (%p2896) target = $region60
        $region59: #{transnormer_decoder_layer.1} parent=55 // pred_region
          %s2899 = sand.u32 %s176, 1
          %s2900 = scalar_lea.sflag [#allocation4], %s2899
          %s2901 = sand.u32 %s176, 1
          %s2902 = smul.addr %s2901, 8
          %s2903 = scalar_lea.vmem [#allocation3], %s2902
          %2904 = dma.done %s2900, 128
        $region60: #{transnormer_decoder_layer.1} parent=55 // pred_fallthru
          _
      $region56: #{transnormer_decoder_layer.1} parent=5 // pred_fallthru
        _
    $region6: #{transnormer_decoder_layer.1} parent=1 // loop_footer
      %s19 = sadd.s32 1, %s15
    $region7: #{transnormer_decoder_layer.1} parent=1 // loop_footer_branch
      %14 = sbr.rel target = $region3
    $region8: #{transnormer_decoder_layer.1} parent=1 // loop_exit
      _
    %2905 = vsyncpa [#allocation4], 1
    %s2906 = scalar_lea.sflag [#allocation4], 1
    %2907 = vsyncpa %s2906, 1

</llo_original>
